<compile_context>
chip_gen: v7x
topology: tpu7x:2x2x1
jax: 0.10.0
libtpu: 0.0.40
codegen_flags: <defaults>
</compile_context>

<pallas_src>
import functools

import jax
import jax.numpy as jnp
from jax.experimental import pallas as pl
from jax.experimental.pallas import tpu as pltpu


# ----------------------------- kernel ---------------------------------------


def _textcnn_kernel(tok_ref, emb_ref, w1_ref, b1_ref, w2_ref, b2_ref,
                    wl_ref, bl_ref, out_ref, *, seq_len, block_b):
    Lp = seq_len + 2                                   # tokens arrive pre-padded with -1
    V, D = emb_ref.shape

    # ---- embedding fused as a one-hot matmul on the MXU (sentinel -1 -> all-zero row) ----
    tok = tok_ref[...]                                                  # (Lp, Bb) int32, lane-dense
    vocab_iota = jax.lax.broadcasted_iota(jnp.int32, (Lp, block_b, V), 2)
    onehot = (tok[:, :, None] == vocab_iota).astype(jnp.float32)       # (Lp, Bb, V)
    xp = jnp.dot(onehot.reshape(Lp * block_b, V), emb_ref[...],
                 preferred_element_type=jnp.float32)                   # (Lp*Bb, D)
    xp = xp.reshape(Lp, block_b, D)                                     # length-major layout

    def conv3_relu(hp, w_ref, b_ref, out_len):
        # hp: (out_len + 2, Bb, Cin), already zero-padded by one row on each side.
        cin = hp.shape[-1]
        # Fold the 3 taps: window rows concatenated on the LANE axis -> one K=3*Cin matmul.
        win = jnp.concatenate(
            [hp[0:out_len], hp[1:out_len + 1], hp[2:out_len + 2]], axis=-1)
        win = win.reshape(out_len * block_b, 3 * cin)
        y = jnp.dot(win, w_ref[...], preferred_element_type=jnp.float32) + b_ref[...]
        y = jnp.maximum(y, 0.0)
        return y.reshape(out_len, block_b, -1)

    def maxpool3(h):
        # MaxPool1d(kernel=3, stride=3, padding=1); -inf padding so pads never win.
        lh, _, c = h.shape
        lo = (lh - 1) // 3 + 1                         # PyTorch output length
        take = min(lh, 3 * lo - 1)
        neg = jnp.full((1, block_b, c), -jnp.inf, jnp.float32)
        parts = [neg, h[:take]] + [neg] * (3 * lo - 1 - take)
        hp = jnp.concatenate(parts, axis=0)            # (3*lo, Bb, c), leading-dim concat
        hp = hp.reshape(lo, 3, block_b, c)             # leading-dim split: layout-free
        return jnp.maximum(jnp.maximum(hp[:, 0], hp[:, 1]), hp[:, 2])   # (lo, Bb, c)

    h = conv3_relu(xp, w1_ref, b1_ref, seq_len)        # (L,  Bb, 16)
    h = maxpool3(h)                                    # (L1, Bb, 16)
    # Dropout(0.25): identity in eval-mode forward.
    zero = jnp.zeros((1, block_b, h.shape[-1]), jnp.float32)
    h = jnp.concatenate([zero, h, zero], axis=0)       # conv2 zero padding (leading dim)
    h = conv3_relu(h, w2_ref, b2_ref, h.shape[0] - 2)  # (L1, Bb, 32)
    h = maxpool3(h)                                    # (L2, Bb, 32)
    feat = jnp.max(h, axis=0)                          # (Bb, 32) global max over length
    # Classifier padded to 128 output lanes in the wrapper -> full-lane (Bb, 128) store.
    y = jnp.dot(feat, wl_ref[...], preferred_element_type=jnp.float32) + bl_ref[...]
    out_ref[...] = y.astype(out_ref.dtype)


# ----------------------------- wrapper ---------------------------------------


_OUT_LANES = 128   # lane-dense output slab; real logits live in the first n_cls lanes


def _round_up(x, m):
    return ((x + m - 1) // m) * m


def _tpu_vmem_capacity():
    try:
        info = pltpu.get_tpu_info()
        cap = int(getattr(info, "vmem_capacity_bytes", 0))
        if cap > 0:
            return cap
    except Exception:
        pass
    return 64 * 1024 * 1024            # conservative (v7x per-core) fallback


def _choose_block_b(batch, requested):
    if requested is None:
        # Per-generation default: ~128 on 64 MiB-VMEM chips (v7x), ~256 on 128 MiB (v5e/v6e).
        requested = 128 if _tpu_vmem_capacity() <= 64 * 1024 * 1024 else 256
    # Keep >= 2 grid steps when possible so both v7x TensorCores get work.
    if batch > 8:
        requested = min(requested, _round_up((batch + 1) // 2, 8))
    else:
        requested = min(requested, 8)
    return max(8, _round_up(requested, 8))


def _vmem_limit_bytes():
    cap = _tpu_vmem_capacity()
    # ~48 MB on a 64 MiB chip (v7x), ~96 MB on 128 MiB chips (v5e/v6e).
    return max(32 * 1024 * 1024, min(96 * 1024 * 1024, (cap * 3) // 4))


def textcnn_forward(tokens, params, *, block_b=None):
    """Fused TextCNN forward.  tokens: (B, L) int.  block_b: batch rows per grid step
    (defaults per TPU generation; always a multiple of 8)."""
    B, L = tokens.shape
    emb = params["embedding"].astype(jnp.float32)
    V, D = emb.shape
    c1 = params["conv1_w"].shape[-1]
    c2 = params["conv2_w"].shape[-1]
    n_cls = params["linear_w"].shape[-1]

    # Fold conv taps: (K=3, Cin, Cout) -> (3*Cin, Cout).
    # NOTE: real PyTorch Conv1d weights are (Cout, Cin, K); transpose to (K, Cin, Cout) first.
    w1f = params["conv1_w"].reshape(3 * D, c1).astype(jnp.float32)
    w2f = params["conv2_w"].reshape(3 * c1, c2).astype(jnp.float32)
    b1 = params["conv1_b"].reshape(1, c1).astype(jnp.float32)
    b2 = params["conv2_b"].reshape(1, c2).astype(jnp.float32)
    # Lane-dense output: pad the classifier to 128 lanes (zeros past n_cls) so the kernel
    # writes unmasked full-lane rows; the wrapper slices the first n_cls columns.
    wl = jnp.zeros((c2, _OUT_LANES), jnp.float32).at[:, :n_cls].set(
        params["linear_w"].astype(jnp.float32))
    bl = jnp.zeros((1, _OUT_LANES), jnp.float32).at[:, :n_cls].set(
        params["linear_b"].reshape(1, n_cls).astype(jnp.float32))

    block_b = _choose_block_b(B, block_b)
    n_blocks = pl.cdiv(B, block_b)
    B_pad = n_blocks * block_b
    Lp = L + 2

    # Tokens: lane-dense (n_blocks, Lp, block_b) int32.  Length is pre-padded with -1
    # sentinels (padded batch rows too); -1 one-hots to an all-zero row, so the zero
    # embedding gives conv1 its zero padding for free.
    # TODO(synk): the fused one-hot embedding assumes a small, VMEM-resident vocab; for large
    # vocabularies keep the gather outside the kernel (or use a DMA gather via
    # PrefetchScalarGridSpec), and single-buffer the table (pipeline_mode=pl.Buffered(1)).
    t = jnp.full((B_pad, Lp), -1, jnp.int32)
    t = t.at[:B, 1:L + 1].set(tokens.astype(jnp.int32))
    tok_lb = t.reshape(n_blocks, block_b, Lp).transpose(0, 2, 1)   # (n_blocks, Lp, block_b)

    kernel = functools.partial(_textcnn_kernel, seq_len=L, block_b=block_b)
    out = pl.pallas_call(
        kernel,
        out_shape=jax.ShapeDtypeStruct((B_pad, _OUT_LANES), jnp.float32),
        grid=(n_blocks,),
        in_specs=[
            pl.BlockSpec((None, Lp, block_b), lambda i: (i, 0, 0)),   # token block (lane-dense)
            pl.BlockSpec((V, D), lambda i: (0, 0)),                   # VMEM-resident table
            pl.BlockSpec(w1f.shape, lambda i: (0, 0)),
            pl.BlockSpec(b1.shape, lambda i: (0, 0)),
            pl.BlockSpec(w2f.shape, lambda i: (0, 0)),
            pl.BlockSpec(b2.shape, lambda i: (0, 0)),
            pl.BlockSpec(wl.shape, lambda i: (0, 0)),
            pl.BlockSpec(bl.shape, lambda i: (0, 0)),
        ],
        out_specs=pl.BlockSpec((block_b, _OUT_LANES), lambda i: (i, 0)),
        compiler_params=pltpu.CompilerParams(
            dimension_semantics=("parallel",),          # batch blocks -> both TCs on v7x
            vmem_limit_bytes=_vmem_limit_bytes()),
    )(tok_lb, emb, w1f, b1, w2f, b2, wl, bl)
    return out[:B, :n_cls]


# ----------------------------- reference --------------------------------------


def reference_forward(tokens, params):
    # Pure-JAX reference mirroring PyTorch semantics (channels-last).
    emb = jnp.take(params["embedding"], tokens, axis=0).astype(jnp.float32)

    def conv_relu(h, w, b):
        B, L, _ = h.shape
        hp = jnp.pad(h, ((0, 0), (1, 1), (0, 0)))
        acc = jnp.zeros((B, L, w.shape[-1]), jnp.float32)
        for k in range(3):
            acc = acc + jnp.einsum("bld,dc->blc", hp[:, k:k + L, :], w[k])
        return jax.nn.relu(acc + b.reshape(1, 1, -1))

    def pool(h):
        B, L, _ = h.shape
        lo = (L - 1) // 3 + 1
        hp = jnp.pad(h, ((0, 0), (1, 2), (0, 0)), constant_values=-jnp.inf)
        idx = 3 * jnp.arange(lo)[:, None] + jnp.arange(3)[None, :]
        return hp[:, idx, :].max(axis=2)

    h = conv_relu(emb, params["conv1_w"], params["conv1_b"])
    h = pool(h)
    h = conv_relu(h, params["conv2_w"], params["conv2_b"])
    h = pool(h)
    g = h.max(axis=1)                                        # (B, 32)
    return g @ params["linear_w"] + params["linear_b"].reshape(1, -1)


# ----------------------------- demo / self-test -------------------------------


if __name__ == "__main__":
    key = jax.random.PRNGKey(0)
    vocab_size, emb_dim = 100, 32
    ks = jax.random.split(key, 9)
    params = {
        "embedding": 0.1 * jax.random.normal(ks[0], (vocab_size, emb_dim), jnp.float32),
        "conv1_w":   0.1 * jax.random.normal(ks[1], (3, emb_dim, 16), jnp.float32),
        "conv1_b":   0.1 * jax.random.normal(ks[2], (1, 16), jnp.float32),
        "conv2_w":   0.1 * jax.random.normal(ks[3], (3, 16, 32), jnp.float32),
        "conv2_b":   0.1 * jax.random.normal(ks[4], (1, 32), jnp.float32),
        "linear_w":  0.1 * jax.random.normal(ks[5], (32, 3), jnp.float32),
        "linear_b":  0.1 * jax.random.normal(ks[6], (1, 3), jnp.float32),
    }

    # (B=10, L=48) exercises batch padding + 2 parallel grid blocks;
    # (B=5,  L=37) exercises a single block and the pool-length arithmetic for L % 3 != 0.
    configs = [(10, 48, ks[7]), (5, 37, ks[8])]
    for B, L, tk in configs:
        tokens = jax.random.randint(tk, (B, L), 0, vocab_size, dtype=jnp.int32)
        out = jax.block_until_ready(textcnn_forward(tokens, params))
        ref = jax.block_until_ready(reference_forward(tokens, params))
        assert out.shape == (B, 3), out.shape
        if not jnp.allclose(out, ref, atol=1e-4, rtol=1e-4):
            raise AssertionError(f"kernel/reference mismatch (B={B}, L={L}):\n{out}\n{ref}")
    print("KERNEL_OK")
</pallas_src>

<mosaic_0001>
module attributes {stable_mosaic.version = 11 : i64} {
  func.func @_textcnn_kernel(%arg0: i32, %arg1: memref<1x50x8xi32, #tpu.memory_space<vmem>>, %arg2: memref<100x32xf32, #tpu.memory_space<vmem>>, %arg3: memref<96x16xf32, #tpu.memory_space<vmem>>, %arg4: memref<1x16xf32, #tpu.memory_space<vmem>>, %arg5: memref<48x32xf32, #tpu.memory_space<vmem>>, %arg6: memref<1x32xf32, #tpu.memory_space<vmem>>, %arg7: memref<32x128xf32, #tpu.memory_space<vmem>>, %arg8: memref<1x128xf32, #tpu.memory_space<vmem>>, %arg9: memref<8x128xf32, #tpu.memory_space<vmem>>) attributes {dimension_semantics = [#tpu.dimension_semantics<parallel>], iteration_bounds = array<i64: 2>, scalar_prefetch = 0 : i64, scratch_operands = 0 : i64, tpu.core_type = #tpu.core_type<tc>, window_params = [{transform_indices = @transform_0, window_bounds = array<i64: 1, 50, 8>}, {pipeline_mode = #tpu.pipeline_mode<synchronous>, transform_indices = @transform_1, window_bounds = array<i64: 100, 32>}, {pipeline_mode = #tpu.pipeline_mode<synchronous>, transform_indices = @transform_2, window_bounds = array<i64: 96, 16>}, {pipeline_mode = #tpu.pipeline_mode<synchronous>, transform_indices = @transform_3, window_bounds = array<i64: 1, 16>}, {pipeline_mode = #tpu.pipeline_mode<synchronous>, transform_indices = @transform_4, window_bounds = array<i64: 48, 32>}, {pipeline_mode = #tpu.pipeline_mode<synchronous>, transform_indices = @transform_5, window_bounds = array<i64: 1, 32>}, {pipeline_mode = #tpu.pipeline_mode<synchronous>, transform_indices = @transform_6, window_bounds = array<i64: 32, 128>}, {pipeline_mode = #tpu.pipeline_mode<synchronous>, transform_indices = @transform_7, window_bounds = array<i64: 1, 128>}, {transform_indices = @transform_8, window_bounds = array<i64: 8, 128>}]} {
    %c0 = arith.constant 0 : index
    %c0_0 = arith.constant 0 : index
    %c0_1 = arith.constant 0 : index
    %0 = vector.load %arg1[%c0, %c0_0, %c0_1] : memref<1x50x8xi32, #tpu.memory_space<vmem>>, vector<1x50x8xi32>
    %1 = vector.shape_cast %0 : vector<1x50x8xi32> to vector<50x8xi32>
    %2 = tpu.iota {dimensions = array<i32: 2>} : vector<50x8x100xi32>
    %3 = vector.shape_cast %1 : vector<50x8xi32> to vector<50x8x1xi32>
    %4 = vector.broadcast %3 : vector<50x8x1xi32> to vector<50x8x100xi32>
    %5 = arith.cmpi eq, %4, %2 : vector<50x8x100xi32>
    %6 = arith.extui %5 : vector<50x8x100xi1> to vector<50x8x100xi32>
    %7 = arith.sitofp %6 : vector<50x8x100xi32> to vector<50x8x100xf32>
    %8 = vector.shape_cast %7 : vector<50x8x100xf32> to vector<400x100xf32>
    %c0_2 = arith.constant 0 : index
    %c0_3 = arith.constant 0 : index
    %9 = vector.load %arg2[%c0_2, %c0_3] : memref<100x32xf32, #tpu.memory_space<vmem>>, vector<100x32xf32>
    %cst = arith.constant dense<0.000000e+00> : vector<400x32xf32>
    %10 = tpu.matmul %8, %9, %cst {dimension_numbers = #tpu.dot_dimension_numbers<[1], [0], [0], [1], [0, 0, 1, 1], [], []>} : vector<400x100xf32>, vector<100x32xf32>, vector<400x32xf32> -> vector<400x32xf32>
    %11 = vector.shape_cast %10 : vector<400x32xf32> to vector<50x8x32xf32>
    %12 = vector.extract_strided_slice %11 {offsets = [0, 0, 0], sizes = [48, 8, 32], strides = [1, 1, 1]} : vector<50x8x32xf32> to vector<48x8x32xf32>
    %13 = vector.extract_strided_slice %11 {offsets = [1, 0, 0], sizes = [48, 8, 32], strides = [1, 1, 1]} : vector<50x8x32xf32> to vector<48x8x32xf32>
    %14 = vector.extract_strided_slice %11 {offsets = [2, 0, 0], sizes = [48, 8, 32], strides = [1, 1, 1]} : vector<50x8x32xf32> to vector<48x8x32xf32>
    %15 = tpu.concatenate %12, %13, %14 in 2 : vector<48x8x32xf32>, vector<48x8x32xf32>, vector<48x8x32xf32> -> vector<48x8x96xf32>
    %16 = vector.shape_cast %15 : vector<48x8x96xf32> to vector<384x96xf32>
    %c0_4 = arith.constant 0 : index
    %c0_5 = arith.constant 0 : index
    %17 = vector.load %arg3[%c0_4, %c0_5] : memref<96x16xf32, #tpu.memory_space<vmem>>, vector<96x16xf32>
    %cst_6 = arith.constant dense<0.000000e+00> : vector<384x16xf32>
    %18 = tpu.matmul %16, %17, %cst_6 {dimension_numbers = #tpu.dot_dimension_numbers<[1], [0], [0], [1], [0, 0, 1, 1], [], []>} : vector<384x96xf32>, vector<96x16xf32>, vector<384x16xf32> -> vector<384x16xf32>
    %c0_7 = arith.constant 0 : index
    %c0_8 = arith.constant 0 : index
    %19 = vector.load %arg4[%c0_7, %c0_8] : memref<1x16xf32, #tpu.memory_space<vmem>>, vector<1x16xf32>
    %20 = vector.broadcast %19 : vector<1x16xf32> to vector<384x16xf32>
    %21 = arith.addf %18, %20 : vector<384x16xf32>
    %cst_9 = arith.constant 0.000000e+00 : f32
    %22 = vector.broadcast %cst_9 : f32 to vector<384x16xf32>
    %23 = arith.maximumf %21, %22 : vector<384x16xf32>
    %24 = vector.shape_cast %23 : vector<384x16xf32> to vector<48x8x16xf32>
    %cst_10 = arith.constant 0xFF800000 : f32
    %25 = vector.broadcast %cst_10 : f32 to vector<1x8x16xf32>
    %26 = vector.extract_strided_slice %24 {offsets = [0, 0, 0], sizes = [47, 8, 16], strides = [1, 1, 1]} : vector<48x8x16xf32> to vector<47x8x16xf32>
    %27 = tpu.concatenate %25, %26 in 0 : vector<1x8x16xf32>, vector<47x8x16xf32> -> vector<48x8x16xf32>
    %28 = vector.shape_cast %27 : vector<48x8x16xf32> to vector<16x3x8x16xf32>
    %29 = vector.extract_strided_slice %28 {offsets = [0, 0, 0, 0], sizes = [16, 1, 8, 16], strides = [1, 1, 1, 1]} : vector<16x3x8x16xf32> to vector<16x1x8x16xf32>
    %30 = vector.shape_cast %29 : vector<16x1x8x16xf32> to vector<16x8x16xf32>
    %31 = vector.extract_strided_slice %28 {offsets = [0, 1, 0, 0], sizes = [16, 1, 8, 16], strides = [1, 1, 1, 1]} : vector<16x3x8x16xf32> to vector<16x1x8x16xf32>
    %32 = vector.shape_cast %31 : vector<16x1x8x16xf32> to vector<16x8x16xf32>
    %33 = arith.maximumf %30, %32 : vector<16x8x16xf32>
    %34 = vector.extract_strided_slice %28 {offsets = [0, 2, 0, 0], sizes = [16, 1, 8, 16], strides = [1, 1, 1, 1]} : vector<16x3x8x16xf32> to vector<16x1x8x16xf32>
    %35 = vector.shape_cast %34 : vector<16x1x8x16xf32> to vector<16x8x16xf32>
    %36 = arith.maximumf %33, %35 : vector<16x8x16xf32>
    %cst_11 = arith.constant 0.000000e+00 : f32
    %37 = vector.broadcast %cst_11 : f32 to vector<1x8x16xf32>
    %38 = tpu.concatenate %37, %36, %37 in 0 : vector<1x8x16xf32>, vector<16x8x16xf32>, vector<1x8x16xf32> -> vector<18x8x16xf32>
    %39 = vector.extract_strided_slice %38 {offsets = [0, 0, 0], sizes = [16, 8, 16], strides = [1, 1, 1]} : vector<18x8x16xf32> to vector<16x8x16xf32>
    %40 = vector.extract_strided_slice %38 {offsets = [1, 0, 0], sizes = [16, 8, 16], strides = [1, 1, 1]} : vector<18x8x16xf32> to vector<16x8x16xf32>
    %41 = vector.extract_strided_slice %38 {offsets = [2, 0, 0], sizes = [16, 8, 16], strides = [1, 1, 1]} : vector<18x8x16xf32> to vector<16x8x16xf32>
    %42 = tpu.concatenate %39, %40, %41 in 2 : vector<16x8x16xf32>, vector<16x8x16xf32>, vector<16x8x16xf32> -> vector<16x8x48xf32>
    %43 = vector.shape_cast %42 : vector<16x8x48xf32> to vector<128x48xf32>
    %c0_12 = arith.constant 0 : index
    %c0_13 = arith.constant 0 : index
    %44 = vector.load %arg5[%c0_12, %c0_13] : memref<48x32xf32, #tpu.memory_space<vmem>>, vector<48x32xf32>
    %cst_14 = arith.constant dense<0.000000e+00> : vector<128x32xf32>
    %45 = tpu.matmul %43, %44, %cst_14 {dimension_numbers = #tpu.dot_dimension_numbers<[1], [0], [0], [1], [0, 0, 1, 1], [], []>} : vector<128x48xf32>, vector<48x32xf32>, vector<128x32xf32> -> vector<128x32xf32>
    %c0_15 = arith.constant 0 : index
    %c0_16 = arith.constant 0 : index
    %46 = vector.load %arg6[%c0_15, %c0_16] : memref<1x32xf32, #tpu.memory_space<vmem>>, vector<1x32xf32>
    %47 = vector.broadcast %46 : vector<1x32xf32> to vector<128x32xf32>
    %48 = arith.addf %45, %47 : vector<128x32xf32>
    %cst_17 = arith.constant 0.000000e+00 : f32
    %49 = vector.broadcast %cst_17 : f32 to vector<128x32xf32>
    %50 = arith.maximumf %48, %49 : vector<128x32xf32>
    %51 = vector.shape_cast %50 : vector<128x32xf32> to vector<16x8x32xf32>
    %cst_18 = arith.constant 0xFF800000 : f32
    %52 = vector.broadcast %cst_18 : f32 to vector<1x8x32xf32>
    %53 = tpu.concatenate %52, %51, %52 in 0 : vector<1x8x32xf32>, vector<16x8x32xf32>, vector<1x8x32xf32> -> vector<18x8x32xf32>
    %54 = vector.shape_cast %53 : vector<18x8x32xf32> to vector<6x3x8x32xf32>
    %55 = vector.extract_strided_slice %54 {offsets = [0, 0, 0, 0], sizes = [6, 1, 8, 32], strides = [1, 1, 1, 1]} : vector<6x3x8x32xf32> to vector<6x1x8x32xf32>
    %56 = vector.shape_cast %55 : vector<6x1x8x32xf32> to vector<6x8x32xf32>
    %57 = vector.extract_strided_slice %54 {offsets = [0, 1, 0, 0], sizes = [6, 1, 8, 32], strides = [1, 1, 1, 1]} : vector<6x3x8x32xf32> to vector<6x1x8x32xf32>
    %58 = vector.shape_cast %57 : vector<6x1x8x32xf32> to vector<6x8x32xf32>
    %59 = arith.maximumf %56, %58 : vector<6x8x32xf32>
    %60 = vector.extract_strided_slice %54 {offsets = [0, 2, 0, 0], sizes = [6, 1, 8, 32], strides = [1, 1, 1, 1]} : vector<6x3x8x32xf32> to vector<6x1x8x32xf32>
    %61 = vector.shape_cast %60 : vector<6x1x8x32xf32> to vector<6x8x32xf32>
    %62 = arith.maximumf %59, %61 : vector<6x8x32xf32>
    %cst_19 = arith.constant dense<0xFF800000> : vector<8x32xf32>
    %63 = vector.multi_reduction <maximumf>, %62, %cst_19 [0] : vector<6x8x32xf32> to vector<8x32xf32>
    %c0_20 = arith.constant 0 : index
    %c0_21 = arith.constant 0 : index
    %64 = vector.load %arg7[%c0_20, %c0_21] : memref<32x128xf32, #tpu.memory_space<vmem>>, vector<32x128xf32>
    %cst_22 = arith.constant dense<0.000000e+00> : vector<8x128xf32>
    %65 = tpu.matmul %63, %64, %cst_22 {dimension_numbers = #tpu.dot_dimension_numbers<[1], [0], [0], [1], [0, 0, 1, 1], [], []>} : vector<8x32xf32>, vector<32x128xf32>, vector<8x128xf32> -> vector<8x128xf32>
    %c0_23 = arith.constant 0 : index
    %c0_24 = arith.constant 0 : index
    %66 = vector.load %arg8[%c0_23, %c0_24] : memref<1x128xf32, #tpu.memory_space<vmem>>, vector<1x128xf32>
    %67 = vector.broadcast %66 : vector<1x128xf32> to vector<8x128xf32>
    %68 = arith.addf %65, %67 : vector<8x128xf32>
    %c0_25 = arith.constant 0 : index
    %c0_26 = arith.constant 0 : index
    %69 = vector.load %arg9[%c0_25, %c0_26] : memref<8x128xf32, #tpu.memory_space<vmem>>, vector<8x128xf32>
    tpu.vector_store %arg9[%c0_25, %c0_26], %68 {strides = array<i32>} : memref<8x128xf32, #tpu.memory_space<vmem>>, vector<8x128xf32>,
    return
  }
  func.func @transform_0(%arg0: i32) -> (i32, i32, i32) {
    %c0_i32 = arith.constant 0 : i32
    %c0_i32_0 = arith.constant 0 : i32
    %c0_i32_1 = arith.constant 0 : i32
    return %arg0, %c0_i32, %c0_i32_0 : i32, i32, i32
  }
  func.func @transform_1(%arg0: i32) -> (i32, i32) {
    %c0_i32 = arith.constant 0 : i32
    %c0_i32_0 = arith.constant 0 : i32
    %c0_i32_1 = arith.constant 0 : i32
    return %c0_i32, %c0_i32_0 : i32, i32
  }
  func.func @transform_2(%arg0: i32) -> (i32, i32) {
    %c0_i32 = arith.constant 0 : i32
    %c0_i32_0 = arith.constant 0 : i32
    %c0_i32_1 = arith.constant 0 : i32
    return %c0_i32, %c0_i32_0 : i32, i32
  }
  func.func @transform_3(%arg0: i32) -> (i32, i32) {
    %c0_i32 = arith.constant 0 : i32
    %c0_i32_0 = arith.constant 0 : i32
    %c0_i32_1 = arith.constant 0 : i32
    return %c0_i32, %c0_i32_0 : i32, i32
  }
  func.func @transform_4(%arg0: i32) -> (i32, i32) {
    %c0_i32 = arith.constant 0 : i32
    %c0_i32_0 = arith.constant 0 : i32
    %c0_i32_1 = arith.constant 0 : i32
    return %c0_i32, %c0_i32_0 : i32, i32
  }
  func.func @transform_5(%arg0: i32) -> (i32, i32) {
    %c0_i32 = arith.constant 0 : i32
    %c0_i32_0 = arith.constant 0 : i32
    %c0_i32_1 = arith.constant 0 : i32
    return %c0_i32, %c0_i32_0 : i32, i32
  }
  func.func @transform_6(%arg0: i32) -> (i32, i32) {
    %c0_i32 = arith.constant 0 : i32
    %c0_i32_0 = arith.constant 0 : i32
    %c0_i32_1 = arith.constant 0 : i32
    return %c0_i32, %c0_i32_0 : i32, i32
  }
  func.func @transform_7(%arg0: i32) -> (i32, i32) {
    %c0_i32 = arith.constant 0 : i32
    %c0_i32_0 = arith.constant 0 : i32
    %c0_i32_1 = arith.constant 0 : i32
    return %c0_i32, %c0_i32_0 : i32, i32
  }
  func.func @transform_8(%arg0: i32) -> (i32, i32) {
    %c0_i32 = arith.constant 0 : i32
    %c0_i32_0 = arith.constant 0 : i32
    return %arg0, %c0_i32 : i32, i32
  }
}

</mosaic_0001>

<llo_original>
// kernel: tpu_custom_call.1
$region0: #{tpu_custom_call.1}
  #allocation0 [shape = 'u32[]', space=smem, size = 0x4, offset = 0x4, fixed_abs, tag = 'smem constant byte address 0x4 - core index']
  #allocation1 [shape = 'u32[144,128]{1,0:T(1,128)}', space=vmem, size = 0x12000, scoped, tag = 'internal scratch']
  %s0 = inlined_call_operand.vmem [shape: s32[2,50,8], index: 0, kind: input, shape index: {}]
  %s1 = inlined_call_operand.vmem [shape: f32[100,32], index: 1, kind: input, shape index: {}]
  %s2 = inlined_call_operand.vmem [shape: f32[96,16], index: 2, kind: input, shape index: {}]
  %s3 = inlined_call_operand.vmem [shape: f32[1,16], index: 3, kind: input, shape index: {}]
  %s4 = inlined_call_operand.vmem [shape: f32[48,32], index: 4, kind: input, shape index: {}]
  %s5 = inlined_call_operand.vmem [shape: f32[1,32], index: 5, kind: input, shape index: {}]
  %s6 = inlined_call_operand.vmem [shape: f32[32,128], index: 6, kind: input, shape index: {}]
  %s7 = inlined_call_operand.vmem [shape: f32[1,128], index: 7, kind: input, shape index: {}]
  %s8 = inlined_call_operand.hbm [shape: f32[16,128], index: 8, kind: output, shape index: {}]
  %s9 = sld [smem:[#allocation0]]
  $region65: #{tpu_custom_call.1} parent=0
    _
  %s11 = ssub.s32 1, %s9
  %s12 = scalar_select 0, %s11, %s9
  $region1: #{tpu_custom_call.1} parent=0
    #allocation2 [shape = 'u8[8192]{0}', space=vmem, size = 0x2000, scoped, tag = 'output window, operand 0']
    #allocation3 [shape = 's32[2]{0}', space=sflag, size = 0x8, scoped, tag = 'scoped memory for tpu_custom_call.1']
    %13 = vsyncpa [#allocation3], 0
    %s14 = scalar_lea.sflag [#allocation3], 1
    %15 = vsyncpa %s14, 0
    loop: start=0, step=1, limit=4
    $region2: #{tpu_custom_call.1} parent=1 // loop_pre_header
      _
    $region3: #{tpu_custom_call.1} parent=1 // loop_header
      %s17 = sphi 0, %s21
      %p18 = scmp.ge.s32.totalorder %s17, 4
      %s27 = sphi 0, %s29
      %s30 = sphi 0, %s27
      %s31 = sphi 0, %s30
      %s47 = sphi 0, %s31
      %s51 = sphi 0, %s51
      %s53 = sphi 0, %s51
      %s54 = sphi 0, %s53
      %s68 = sphi 0, %s54
      %s72 = sphi 0, %s72
      %s74 = sphi 0, %s72
      %s75 = sphi 0, %s74
      %s89 = sphi 0, %s75
      %s93 = sphi 0, %s93
      %s95 = sphi 0, %s93
      %s96 = sphi 0, %s95
      %s110 = sphi 0, %s96
      %s114 = sphi 0, %s114
      %s116 = sphi 0, %s114
      %s117 = sphi 0, %s116
      %s131 = sphi 0, %s117
      %s135 = sphi 0, %s135
      %s137 = sphi 0, %s135
      %s138 = sphi 0, %s137
      %s152 = sphi 0, %s138
      %s156 = sphi 0, %s156
      %s158 = sphi 0, %s156
      %s159 = sphi 0, %s158
      %s173 = sphi 0, %s159
      %s177 = sphi 0, %s177
      %s179 = sphi 0, %s177
      %s180 = sphi 0, %s179
      %s194 = sphi 0, %s180
      %s200 = sphi 0, %s202
      %s203 = sphi 0, %s200
      %s204 = sphi 0, %s203
      %s220 = sphi 0, %s204
    $region4: #{tpu_custom_call.1} parent=1 // loop_header_branch
      %20 = sbr.rel (%p18) target = $region8
    $region5: #{tpu_custom_call.1} parent=1 // loop_body
      %s22 = ssub.s32 %s17, 1
      %s23 = ssub.s32 %s17, 2
      %s24 = sadd.s32 %s17, 1
      %s25 = ssub.s32 %s17, %s24
      %p26 = scmp.eq.s32.totalorder %s25, 0
      %s28 = sadd.s32 %s27, 1
      %s29 = scalar_select %p26, %s27, %s28
      %p32 = pneg %p26
      %p33 = scmp.eq.s32.totalorder %s17, 1
      %p34 = por %p32, %p33
      %p35 = scmp.ne.s32.totalorder %s27, %s30
      %p36 = scmp.eq.s32.totalorder %s17, 0
      %p37 = por %p35, %p36
      %p38 = scmp.ne.s32.totalorder %s27, %s30
      %p39 = scmp.eq.s32.totalorder %s22, 1
      %p40 = por %p38, %p39
      %p41 = scmp.ne.s32.totalorder %s30, %s31
      %p42 = scmp.eq.s32.totalorder %s22, 0
      %p43 = por %p41, %p42
      %p44 = scmp.ne.s32.totalorder %s30, %s31
      %p45 = scmp.eq.s32.totalorder %s23, 1
      %p46 = por %p44, %p45
      %p48 = scmp.ne.s32.totalorder %s31, %s47
      %p49 = scmp.eq.s32.totalorder %s23, 0
      %p50 = por %p48, %p49
      %s52 = sadd.s32 %s51, 1
      %p55 = scmp.eq.s32.totalorder %s17, 1
      %p56 = scmp.ne.s32.totalorder %s51, %s53
      %p57 = scmp.eq.s32.totalorder %s17, 0
      %p58 = por %p56, %p57
      %p59 = scmp.ne.s32.totalorder %s51, %s53
      %p60 = scmp.eq.s32.totalorder %s22, 1
      %p61 = por %p59, %p60
      %p62 = scmp.ne.s32.totalorder %s53, %s54
      %p63 = scmp.eq.s32.totalorder %s22, 0
      %p64 = por %p62, %p63
      %p65 = scmp.ne.s32.totalorder %s53, %s54
      %p66 = scmp.eq.s32.totalorder %s23, 1
      %p67 = por %p65, %p66
      %p69 = scmp.ne.s32.totalorder %s54, %s68
      %p70 = scmp.eq.s32.totalorder %s23, 0
      %p71 = por %p69, %p70
      %s73 = sadd.s32 %s72, 1
      %p76 = scmp.eq.s32.totalorder %s17, 1
      %p77 = scmp.ne.s32.totalorder %s72, %s74
      %p78 = scmp.eq.s32.totalorder %s17, 0
      %p79 = por %p77, %p78
      %p80 = scmp.ne.s32.totalorder %s72, %s74
      %p81 = scmp.eq.s32.totalorder %s22, 1
      %p82 = por %p80, %p81
      %p83 = scmp.ne.s32.totalorder %s74, %s75
      %p84 = scmp.eq.s32.totalorder %s22, 0
      %p85 = por %p83, %p84
      %p86 = scmp.ne.s32.totalorder %s74, %s75
      %p87 = scmp.eq.s32.totalorder %s23, 1
      %p88 = por %p86, %p87
      %p90 = scmp.ne.s32.totalorder %s75, %s89
      %p91 = scmp.eq.s32.totalorder %s23, 0
      %p92 = por %p90, %p91
      %s94 = sadd.s32 %s93, 1
      %p97 = scmp.eq.s32.totalorder %s17, 1
      %p98 = scmp.ne.s32.totalorder %s93, %s95
      %p99 = scmp.eq.s32.totalorder %s17, 0
      %p100 = por %p98, %p99
      %p101 = scmp.ne.s32.totalorder %s93, %s95
      %p102 = scmp.eq.s32.totalorder %s22, 1
      %p103 = por %p101, %p102
      %p104 = scmp.ne.s32.totalorder %s95, %s96
      %p105 = scmp.eq.s32.totalorder %s22, 0
      %p106 = por %p104, %p105
      %p107 = scmp.ne.s32.totalorder %s95, %s96
      %p108 = scmp.eq.s32.totalorder %s23, 1
      %p109 = por %p107, %p108
      %p111 = scmp.ne.s32.totalorder %s96, %s110
      %p112 = scmp.eq.s32.totalorder %s23, 0
      %p113 = por %p111, %p112
      %s115 = sadd.s32 %s114, 1
      %p118 = scmp.eq.s32.totalorder %s17, 1
      %p119 = scmp.ne.s32.totalorder %s114, %s116
      %p120 = scmp.eq.s32.totalorder %s17, 0
      %p121 = por %p119, %p120
      %p122 = scmp.ne.s32.totalorder %s114, %s116
      %p123 = scmp.eq.s32.totalorder %s22, 1
      %p124 = por %p122, %p123
      %p125 = scmp.ne.s32.totalorder %s116, %s117
      %p126 = scmp.eq.s32.totalorder %s22, 0
      %p127 = por %p125, %p126
      %p128 = scmp.ne.s32.totalorder %s116, %s117
      %p129 = scmp.eq.s32.totalorder %s23, 1
      %p130 = por %p128, %p129
      %p132 = scmp.ne.s32.totalorder %s117, %s131
      %p133 = scmp.eq.s32.totalorder %s23, 0
      %p134 = por %p132, %p133
      %s136 = sadd.s32 %s135, 1
      %p139 = scmp.eq.s32.totalorder %s17, 1
      %p140 = scmp.ne.s32.totalorder %s135, %s137
      %p141 = scmp.eq.s32.totalorder %s17, 0
      %p142 = por %p140, %p141
      %p143 = scmp.ne.s32.totalorder %s135, %s137
      %p144 = scmp.eq.s32.totalorder %s22, 1
      %p145 = por %p143, %p144
      %p146 = scmp.ne.s32.totalorder %s137, %s138
      %p147 = scmp.eq.s32.totalorder %s22, 0
      %p148 = por %p146, %p147
      %p149 = scmp.ne.s32.totalorder %s137, %s138
      %p150 = scmp.eq.s32.totalorder %s23, 1
      %p151 = por %p149, %p150
      %p153 = scmp.ne.s32.totalorder %s138, %s152
      %p154 = scmp.eq.s32.totalorder %s23, 0
      %p155 = por %p153, %p154
      %s157 = sadd.s32 %s156, 1
      %p160 = scmp.eq.s32.totalorder %s17, 1
      %p161 = scmp.ne.s32.totalorder %s156, %s158
      %p162 = scmp.eq.s32.totalorder %s17, 0
      %p163 = por %p161, %p162
      %p164 = scmp.ne.s32.totalorder %s156, %s158
      %p165 = scmp.eq.s32.totalorder %s22, 1
      %p166 = por %p164, %p165
      %p167 = scmp.ne.s32.totalorder %s158, %s159
      %p168 = scmp.eq.s32.totalorder %s22, 0
      %p169 = por %p167, %p168
      %p170 = scmp.ne.s32.totalorder %s158, %s159
      %p171 = scmp.eq.s32.totalorder %s23, 1
      %p172 = por %p170, %p171
      %p174 = scmp.ne.s32.totalorder %s159, %s173
      %p175 = scmp.eq.s32.totalorder %s23, 0
      %p176 = por %p174, %p175
      %s178 = sadd.s32 %s177, 1
      %p181 = scmp.eq.s32.totalorder %s17, 1
      %p182 = scmp.ne.s32.totalorder %s177, %s179
      %p183 = scmp.eq.s32.totalorder %s17, 0
      %p184 = por %p182, %p183
      %p185 = scmp.ne.s32.totalorder %s177, %s179
      %p186 = scmp.eq.s32.totalorder %s22, 1
      %p187 = por %p185, %p186
      %p188 = scmp.ne.s32.totalorder %s179, %s180
      %p189 = scmp.eq.s32.totalorder %s22, 0
      %p190 = por %p188, %p189
      %p191 = scmp.ne.s32.totalorder %s179, %s180
      %p192 = scmp.eq.s32.totalorder %s23, 1
      %p193 = por %p191, %p192
      %p195 = scmp.ne.s32.totalorder %s180, %s194
      %p196 = scmp.eq.s32.totalorder %s23, 0
      %p197 = por %p195, %p196
      %s198 = ssub.s32 %s17, %s24
      %p199 = scmp.eq.s32.totalorder %s198, 0
      %s201 = sadd.s32 %s200, 1
      %s202 = scalar_select %p199, %s200, %s201
      %p205 = pneg %p199
      %p206 = scmp.eq.s32.totalorder %s17, 1
      %p207 = por %p205, %p206
      %p208 = scmp.ne.s32.totalorder %s200, %s203
      %p209 = scmp.eq.s32.totalorder %s17, 0
      %p210 = por %p208, %p209
      %p211 = scmp.ne.s32.totalorder %s200, %s203
      %p212 = scmp.eq.s32.totalorder %s22, 1
      %p213 = por %p211, %p212
      %p214 = scmp.ne.s32.totalorder %s203, %s204
      %p215 = scmp.eq.s32.totalorder %s22, 0
      %p216 = por %p214, %p215
      %p217 = scmp.ne.s32.totalorder %s203, %s204
      %p218 = scmp.eq.s32.totalorder %s23, 1
      %p219 = por %p217, %p218
      %p221 = scmp.ne.s32.totalorder %s204, %s220
      %p222 = scmp.eq.s32.totalorder %s23, 0
      %p223 = por %p221, %p222
      %p224 = scmp.le.s32.totalorder 1, %s17
      %p225 = scmp.lt.s32.totalorder %s17, 3
      %p226 = pnand %p224, %p225
      %p227 = pneg %p226
      // Predicated region
      $region9: #{tpu_custom_call.1} parent=5 // pred_check
        _
      $region10: #{tpu_custom_call.1} parent=5 // pred_check_branch
        %229 = sbr.rel (%p226) target = $region12
      $region11: #{tpu_custom_call.1} parent=5 // pred_region
        %s230 = ssub.s32 %s17, 1
        // Predicated region
        $region13: #{tpu_custom_call.1} parent=11 // pred_check
          %p231 = pneg %p64
        $region14: #{tpu_custom_call.1} parent=11 // pred_check_branch
          %233 = sbr.rel (%p231) target = $region16
        $region15: #{tpu_custom_call.1} parent=11 // pred_region
          _
        $region16: #{tpu_custom_call.1} parent=11 // pred_fallthru
          _
        // Predicated region
        $region17: #{tpu_custom_call.1} parent=11 // pred_check
          %p234 = pneg %p85
        $region18: #{tpu_custom_call.1} parent=11 // pred_check_branch
          %236 = sbr.rel (%p234) target = $region20
        $region19: #{tpu_custom_call.1} parent=11 // pred_region
          _
        $region20: #{tpu_custom_call.1} parent=11 // pred_fallthru
          _
        // Predicated region
        $region21: #{tpu_custom_call.1} parent=11 // pred_check
          %p237 = pneg %p106
        $region22: #{tpu_custom_call.1} parent=11 // pred_check_branch
          %239 = sbr.rel (%p237) target = $region24
        $region23: #{tpu_custom_call.1} parent=11 // pred_region
          _
        $region24: #{tpu_custom_call.1} parent=11 // pred_fallthru
          _
        // Predicated region
        $region25: #{tpu_custom_call.1} parent=11 // pred_check
          %p240 = pneg %p127
        $region26: #{tpu_custom_call.1} parent=11 // pred_check_branch
          %242 = sbr.rel (%p240) target = $region28
        $region27: #{tpu_custom_call.1} parent=11 // pred_region
          _
        $region28: #{tpu_custom_call.1} parent=11 // pred_fallthru
          _
        // Predicated region
        $region29: #{tpu_custom_call.1} parent=11 // pred_check
          %p243 = pneg %p148
        $region30: #{tpu_custom_call.1} parent=11 // pred_check_branch
          %245 = sbr.rel (%p243) target = $region32
        $region31: #{tpu_custom_call.1} parent=11 // pred_region
          _
        $region32: #{tpu_custom_call.1} parent=11 // pred_fallthru
          _
        // Predicated region
        $region33: #{tpu_custom_call.1} parent=11 // pred_check
          %p246 = pneg %p169
        $region34: #{tpu_custom_call.1} parent=11 // pred_check_branch
          %248 = sbr.rel (%p246) target = $region36
        $region35: #{tpu_custom_call.1} parent=11 // pred_region
          _
        $region36: #{tpu_custom_call.1} parent=11 // pred_fallthru
          _
        // Predicated region
        $region37: #{tpu_custom_call.1} parent=11 // pred_check
          %p249 = pneg %p190
        $region38: #{tpu_custom_call.1} parent=11 // pred_check_branch
          %251 = sbr.rel (%p249) target = $region40
        $region39: #{tpu_custom_call.1} parent=11 // pred_region
          _
        $region40: #{tpu_custom_call.1} parent=11 // pred_fallthru
          _
      $region12: #{tpu_custom_call.1} parent=5 // pred_fallthru
        _
      %p252 = scmp.lt.s32.totalorder %s17, 2
      // Predicated region
      $region41: #{tpu_custom_call.1} parent=5 // pred_check
        %p253 = pneg %p252
      $region42: #{tpu_custom_call.1} parent=5 // pred_check_branch
        %255 = sbr.rel (%p253) target = $region44
      $region43: #{tpu_custom_call.1} parent=5 // pred_region
        // Predicated region
        $region45: #{tpu_custom_call.1} parent=43 // pred_check
          %p256 = pneg %p37
        $region46: #{tpu_custom_call.1} parent=43 // pred_check_branch
          %258 = sbr.rel (%p256) target = $region48
        $region47: #{tpu_custom_call.1} parent=43 // pred_region
          %p259 = scmp.lt.s32.totalorder %s17, 1
          %s260 = scalar_select %p259, %s17, 1
          %s261 = smul.addr %s260, 7
          %s262 = smul.addr %s261, 8
          %s263 = scalar_lea.vmem %s0, %s262
        $region48: #{tpu_custom_call.1} parent=43 // pred_fallthru
          _
      $region44: #{tpu_custom_call.1} parent=5 // pred_fallthru
        _
      %p264 = scmp.le.s32.totalorder 1, %s17
      %p265 = scmp.lt.s32.totalorder %s17, 3
      %p266 = pnand %p264, %p265
      %p267 = pneg %p266
      // Predicated region
      $region49: #{tpu_custom_call.1} parent=5 // pred_check
        _
      $region50: #{tpu_custom_call.1} parent=5 // pred_check_branch
        %269 = sbr.rel (%p266) target = $region52
      $region51: #{tpu_custom_call.1} parent=5 // pred_region
        %s270 = ssub.s32 %s17, 1
        %p271 = scmp.lt.s32.totalorder %s22, 1
        %s272 = scalar_select %p271, %s22, 1
        %s273 = smul.addr %s272, 7
        %s274 = smul.addr %s273, 8
        %s275 = scalar_lea.vmem %s0, %s274
        %p276 = pneg %p43
        %p277 = pneg %p40
        %p278 = pneg %p64
        %p279 = pneg %p61
        %p280 = pneg %p85
        %p281 = pneg %p82
        %p282 = pneg %p106
        %p283 = pneg %p103
        %p284 = pneg %p127
        %p285 = pneg %p124
        %p286 = pneg %p148
        %p287 = pneg %p145
        %p288 = pneg %p169
        %p289 = pneg %p166
        %p290 = pneg %p190
        %p291 = pneg %p187
        %p292 = pneg %p216
        %p293 = pneg %p213
        %s294 = sand.u32 %s203, 1
        %s295 = scalar_lea.sflag [#allocation3], %s294
        %s296 = sand.u32 %s203, 1
        %s297 = smul.addr %s296, 8
        %s298 = scalar_lea.vmem [#allocation2], %s297
        %p299 = scmp.lt.s32.totalorder %s22, 1
        %s300 = scalar_select %p299, %s22, 1
        %s301 = smul.addr %s300, 7
        %s302 = smul.addr %s301, 8
        %s303 = scalar_lea.vmem %s0, %s302
        %v304 = vld [vmem:[%s303] sm:$0xff]
        %v305 = vld [vmem:[%s303 + $0x8] sm:$0xff]
        %v306 = vld [vmem:[%s303 + $0x10] sm:$0xff]
        %v307 = vld [vmem:[%s303 + $0x18] sm:$0xff]
        %v308 = vld [vmem:[%s303 + $0x20] sm:$0xff]
        %v309 = vld [vmem:[%s303 + $0x28] sm:$0xff]
        %v310 = vld [vmem:[%s303 + $0x30] sm:$0x3]
        %v311 = vlaneseq
        %v312 = vand.u32 %v311, 127
        %v313 = vlaneseq
        %v314 = vshrl.u32 %v313, 7
        %v315 = vsub.s32 0, %v314
        %v316 = vrot.slane %v304, %v315
        %318 = vbcast.lane.b32.xlu0 %v316, 256
        %v319 = vpop.permute.xlu0 %318
        %v320 = vlaneseq
        %v321 = vshrl.u32 %v320, 7
        %v322 = vsub.s32 1, %v321
        %v323 = vrot.slane %v304, %v322
        %325 = vbcast.lane.b32.xlu0 %v323, 256
        %v326 = vpop.permute.xlu0 %325
        %v327 = vlaneseq
        %v328 = vshrl.u32 %v327, 7
        %v329 = vsub.s32 2, %v328
        %v330 = vrot.slane %v304, %v329
        %332 = vbcast.lane.b32.xlu0 %v330, 256
        %v333 = vpop.permute.xlu0 %332
        %v334 = vlaneseq
        %v335 = vshrl.u32 %v334, 7
        %v336 = vsub.s32 3, %v335
        %v337 = vrot.slane %v304, %v336
        %339 = vbcast.lane.b32.xlu0 %v337, 256
        %v340 = vpop.permute.xlu0 %339
        %v341 = vlaneseq
        %v342 = vshrl.u32 %v341, 7
        %v343 = vsub.s32 4, %v342
        %v344 = vrot.slane %v304, %v343
        %346 = vbcast.lane.b32.xlu0 %v344, 256
        %v347 = vpop.permute.xlu0 %346
        %v348 = vlaneseq
        %v349 = vshrl.u32 %v348, 7
        %v350 = vsub.s32 5, %v349
        %v351 = vrot.slane %v304, %v350
        %353 = vbcast.lane.b32.xlu0 %v351, 256
        %v354 = vpop.permute.xlu0 %353
        %v355 = vlaneseq
        %v356 = vshrl.u32 %v355, 7
        %v357 = vsub.s32 6, %v356
        %v358 = vrot.slane %v304, %v357
        %360 = vbcast.lane.b32.xlu0 %v358, 256
        %v361 = vpop.permute.xlu0 %360
        %v362 = vlaneseq
        %v363 = vshrl.u32 %v362, 7
        %v364 = vsub.s32 7, %v363
        %v365 = vrot.slane %v304, %v364
        %367 = vbcast.lane.b32.xlu0 %v365, 256
        %v368 = vpop.permute.xlu0 %367
        %v369 = vlaneseq
        %v370 = vshrl.u32 %v369, 7
        %v371 = vsub.s32 0, %v370
        %v372 = vrot.slane %v305, %v371
        %374 = vbcast.lane.b32.xlu0 %v372, 256
        %v375 = vpop.permute.xlu0 %374
        %v376 = vlaneseq
        %v377 = vshrl.u32 %v376, 7
        %v378 = vsub.s32 1, %v377
        %v379 = vrot.slane %v305, %v378
        %381 = vbcast.lane.b32.xlu0 %v379, 256
        %v382 = vpop.permute.xlu0 %381
        %v383 = vlaneseq
        %v384 = vshrl.u32 %v383, 7
        %v385 = vsub.s32 2, %v384
        %v386 = vrot.slane %v305, %v385
        %388 = vbcast.lane.b32.xlu0 %v386, 256
        %v389 = vpop.permute.xlu0 %388
        %v390 = vlaneseq
        %v391 = vshrl.u32 %v390, 7
        %v392 = vsub.s32 3, %v391
        %v393 = vrot.slane %v305, %v392
        %395 = vbcast.lane.b32.xlu0 %v393, 256
        %v396 = vpop.permute.xlu0 %395
        %v397 = vlaneseq
        %v398 = vshrl.u32 %v397, 7
        %v399 = vsub.s32 4, %v398
        %v400 = vrot.slane %v305, %v399
        %402 = vbcast.lane.b32.xlu0 %v400, 256
        %v403 = vpop.permute.xlu0 %402
        %v404 = vlaneseq
        %v405 = vshrl.u32 %v404, 7
        %v406 = vsub.s32 5, %v405
        %v407 = vrot.slane %v305, %v406
        %409 = vbcast.lane.b32.xlu0 %v407, 256
        %v410 = vpop.permute.xlu0 %409
        %v411 = vlaneseq
        %v412 = vshrl.u32 %v411, 7
        %v413 = vsub.s32 6, %v412
        %v414 = vrot.slane %v305, %v413
        %416 = vbcast.lane.b32.xlu0 %v414, 256
        %v417 = vpop.permute.xlu0 %416
        %v418 = vlaneseq
        %v419 = vshrl.u32 %v418, 7
        %v420 = vsub.s32 7, %v419
        %v421 = vrot.slane %v305, %v420
        %423 = vbcast.lane.b32.xlu0 %v421, 256
        %v424 = vpop.permute.xlu0 %423
        %v425 = vlaneseq
        %v426 = vshrl.u32 %v425, 7
        %v427 = vsub.s32 0, %v426
        %v428 = vrot.slane %v306, %v427
        %430 = vbcast.lane.b32.xlu0 %v428, 256
        %v431 = vpop.permute.xlu0 %430
        %v432 = vlaneseq
        %v433 = vshrl.u32 %v432, 7
        %v434 = vsub.s32 1, %v433
        %v435 = vrot.slane %v306, %v434
        %437 = vbcast.lane.b32.xlu0 %v435, 256
        %v438 = vpop.permute.xlu0 %437
        %v439 = vlaneseq
        %v440 = vshrl.u32 %v439, 7
        %v441 = vsub.s32 2, %v440
        %v442 = vrot.slane %v306, %v441
        %444 = vbcast.lane.b32.xlu0 %v442, 256
        %v445 = vpop.permute.xlu0 %444
        %v446 = vlaneseq
        %v447 = vshrl.u32 %v446, 7
        %v448 = vsub.s32 3, %v447
        %v449 = vrot.slane %v306, %v448
        %451 = vbcast.lane.b32.xlu0 %v449, 256
        %v452 = vpop.permute.xlu0 %451
        %v453 = vlaneseq
        %v454 = vshrl.u32 %v453, 7
        %v455 = vsub.s32 4, %v454
        %v456 = vrot.slane %v306, %v455
        %458 = vbcast.lane.b32.xlu0 %v456, 256
        %v459 = vpop.permute.xlu0 %458
        %v460 = vlaneseq
        %v461 = vshrl.u32 %v460, 7
        %v462 = vsub.s32 5, %v461
        %v463 = vrot.slane %v306, %v462
        %465 = vbcast.lane.b32.xlu0 %v463, 256
        %v466 = vpop.permute.xlu0 %465
        %v467 = vlaneseq
        %v468 = vshrl.u32 %v467, 7
        %v469 = vsub.s32 6, %v468
        %v470 = vrot.slane %v306, %v469
        %472 = vbcast.lane.b32.xlu0 %v470, 256
        %v473 = vpop.permute.xlu0 %472
        %v474 = vlaneseq
        %v475 = vshrl.u32 %v474, 7
        %v476 = vsub.s32 7, %v475
        %v477 = vrot.slane %v306, %v476
        %479 = vbcast.lane.b32.xlu0 %v477, 256
        %v480 = vpop.permute.xlu0 %479
        %v481 = vlaneseq
        %v482 = vshrl.u32 %v481, 7
        %v483 = vsub.s32 0, %v482
        %v484 = vrot.slane %v307, %v483
        %486 = vbcast.lane.b32.xlu0 %v484, 256
        %v487 = vpop.permute.xlu0 %486
        %v488 = vlaneseq
        %v489 = vshrl.u32 %v488, 7
        %v490 = vsub.s32 1, %v489
        %v491 = vrot.slane %v307, %v490
        %493 = vbcast.lane.b32.xlu0 %v491, 256
        %v494 = vpop.permute.xlu0 %493
        %v495 = vlaneseq
        %v496 = vshrl.u32 %v495, 7
        %v497 = vsub.s32 2, %v496
        %v498 = vrot.slane %v307, %v497
        %500 = vbcast.lane.b32.xlu0 %v498, 256
        %v501 = vpop.permute.xlu0 %500
        %v502 = vlaneseq
        %v503 = vshrl.u32 %v502, 7
        %v504 = vsub.s32 3, %v503
        %v505 = vrot.slane %v307, %v504
        %507 = vbcast.lane.b32.xlu0 %v505, 256
        %v508 = vpop.permute.xlu0 %507
        %v509 = vlaneseq
        %v510 = vshrl.u32 %v509, 7
        %v511 = vsub.s32 4, %v510
        %v512 = vrot.slane %v307, %v511
        %514 = vbcast.lane.b32.xlu0 %v512, 256
        %v515 = vpop.permute.xlu0 %514
        %v516 = vlaneseq
        %v517 = vshrl.u32 %v516, 7
        %v518 = vsub.s32 5, %v517
        %v519 = vrot.slane %v307, %v518
        %521 = vbcast.lane.b32.xlu0 %v519, 256
        %v522 = vpop.permute.xlu0 %521
        %v523 = vlaneseq
        %v524 = vshrl.u32 %v523, 7
        %v525 = vsub.s32 6, %v524
        %v526 = vrot.slane %v307, %v525
        %528 = vbcast.lane.b32.xlu0 %v526, 256
        %v529 = vpop.permute.xlu0 %528
        %v530 = vlaneseq
        %v531 = vshrl.u32 %v530, 7
        %v532 = vsub.s32 7, %v531
        %v533 = vrot.slane %v307, %v532
        %535 = vbcast.lane.b32.xlu0 %v533, 256
        %v536 = vpop.permute.xlu0 %535
        %v537 = vlaneseq
        %v538 = vshrl.u32 %v537, 7
        %v539 = vsub.s32 0, %v538
        %v540 = vrot.slane %v308, %v539
        %542 = vbcast.lane.b32.xlu0 %v540, 256
        %v543 = vpop.permute.xlu0 %542
        %v544 = vlaneseq
        %v545 = vshrl.u32 %v544, 7
        %v546 = vsub.s32 1, %v545
        %v547 = vrot.slane %v308, %v546
        %549 = vbcast.lane.b32.xlu0 %v547, 256
        %v550 = vpop.permute.xlu0 %549
        %v551 = vlaneseq
        %v552 = vshrl.u32 %v551, 7
        %v553 = vsub.s32 2, %v552
        %v554 = vrot.slane %v308, %v553
        %556 = vbcast.lane.b32.xlu0 %v554, 256
        %v557 = vpop.permute.xlu0 %556
        %v558 = vlaneseq
        %v559 = vshrl.u32 %v558, 7
        %v560 = vsub.s32 3, %v559
        %v561 = vrot.slane %v308, %v560
        %563 = vbcast.lane.b32.xlu0 %v561, 256
        %v564 = vpop.permute.xlu0 %563
        %v565 = vlaneseq
        %v566 = vshrl.u32 %v565, 7
        %v567 = vsub.s32 4, %v566
        %v568 = vrot.slane %v308, %v567
        %570 = vbcast.lane.b32.xlu0 %v568, 256
        %v571 = vpop.permute.xlu0 %570
        %v572 = vlaneseq
        %v573 = vshrl.u32 %v572, 7
        %v574 = vsub.s32 5, %v573
        %v575 = vrot.slane %v308, %v574
        %577 = vbcast.lane.b32.xlu0 %v575, 256
        %v578 = vpop.permute.xlu0 %577
        %v579 = vlaneseq
        %v580 = vshrl.u32 %v579, 7
        %v581 = vsub.s32 6, %v580
        %v582 = vrot.slane %v308, %v581
        %584 = vbcast.lane.b32.xlu0 %v582, 256
        %v585 = vpop.permute.xlu0 %584
        %v586 = vlaneseq
        %v587 = vshrl.u32 %v586, 7
        %v588 = vsub.s32 7, %v587
        %v589 = vrot.slane %v308, %v588
        %591 = vbcast.lane.b32.xlu0 %v589, 256
        %v592 = vpop.permute.xlu0 %591
        %v593 = vlaneseq
        %v594 = vshrl.u32 %v593, 7
        %v595 = vsub.s32 0, %v594
        %v596 = vrot.slane %v309, %v595
        %598 = vbcast.lane.b32.xlu0 %v596, 256
        %v599 = vpop.permute.xlu0 %598
        %v600 = vlaneseq
        %v601 = vshrl.u32 %v600, 7
        %v602 = vsub.s32 1, %v601
        %v603 = vrot.slane %v309, %v602
        %605 = vbcast.lane.b32.xlu0 %v603, 256
        %v606 = vpop.permute.xlu0 %605
        %v607 = vlaneseq
        %v608 = vshrl.u32 %v607, 7
        %v609 = vsub.s32 2, %v608
        %v610 = vrot.slane %v309, %v609
        %612 = vbcast.lane.b32.xlu0 %v610, 256
        %v613 = vpop.permute.xlu0 %612
        %v614 = vlaneseq
        %v615 = vshrl.u32 %v614, 7
        %v616 = vsub.s32 3, %v615
        %v617 = vrot.slane %v309, %v616
        %619 = vbcast.lane.b32.xlu0 %v617, 256
        %v620 = vpop.permute.xlu0 %619
        %v621 = vlaneseq
        %v622 = vshrl.u32 %v621, 7
        %v623 = vsub.s32 4, %v622
        %v624 = vrot.slane %v309, %v623
        %626 = vbcast.lane.b32.xlu0 %v624, 256
        %v627 = vpop.permute.xlu0 %626
        %v628 = vlaneseq
        %v629 = vshrl.u32 %v628, 7
        %v630 = vsub.s32 5, %v629
        %v631 = vrot.slane %v309, %v630
        %633 = vbcast.lane.b32.xlu0 %v631, 256
        %v634 = vpop.permute.xlu0 %633
        %v635 = vlaneseq
        %v636 = vshrl.u32 %v635, 7
        %v637 = vsub.s32 6, %v636
        %v638 = vrot.slane %v309, %v637
        %640 = vbcast.lane.b32.xlu0 %v638, 256
        %v641 = vpop.permute.xlu0 %640
        %v642 = vlaneseq
        %v643 = vshrl.u32 %v642, 7
        %v644 = vsub.s32 7, %v643
        %v645 = vrot.slane %v309, %v644
        %647 = vbcast.lane.b32.xlu0 %v645, 256
        %v648 = vpop.permute.xlu0 %647
        %v649 = vlaneseq
        %v650 = vshrl.u32 %v649, 7
        %v651 = vsub.s32 0, %v650
        %v652 = vrot.slane %v310, %v651
        %654 = vbcast.lane.b32.xlu0 %v652, 256
        %v655 = vpop.permute.xlu0 %654
        %v656 = vlaneseq
        %v657 = vshrl.u32 %v656, 7
        %v658 = vsub.s32 1, %v657
        %v659 = vrot.slane %v310, %v658
        %661 = vbcast.lane.b32.xlu0 %v659, 256
        %v662 = vpop.permute.xlu0 %661
        %vm663 = vcmp.eq.s32.totalorder %v319, %v312
        %vm664 = vcmp.eq.s32.totalorder %v326, %v312
        %vm665 = vcmp.eq.s32.totalorder %v333, %v312
        %vm666 = vcmp.eq.s32.totalorder %v340, %v312
        %vm667 = vcmp.eq.s32.totalorder %v347, %v312
        %vm668 = vcmp.eq.s32.totalorder %v354, %v312
        %vm669 = vcmp.eq.s32.totalorder %v361, %v312
        %vm670 = vcmp.eq.s32.totalorder %v368, %v312
        %vm671 = vcmp.eq.s32.totalorder %v375, %v312
        %vm672 = vcmp.eq.s32.totalorder %v382, %v312
        %vm673 = vcmp.eq.s32.totalorder %v389, %v312
        %vm674 = vcmp.eq.s32.totalorder %v396, %v312
        %vm675 = vcmp.eq.s32.totalorder %v403, %v312
        %vm676 = vcmp.eq.s32.totalorder %v410, %v312
        %vm677 = vcmp.eq.s32.totalorder %v417, %v312
        %vm678 = vcmp.eq.s32.totalorder %v424, %v312
        %vm679 = vcmp.eq.s32.totalorder %v431, %v312
        %vm680 = vcmp.eq.s32.totalorder %v438, %v312
        %vm681 = vcmp.eq.s32.totalorder %v445, %v312
        %vm682 = vcmp.eq.s32.totalorder %v452, %v312
        %vm683 = vcmp.eq.s32.totalorder %v459, %v312
        %vm684 = vcmp.eq.s32.totalorder %v466, %v312
        %vm685 = vcmp.eq.s32.totalorder %v473, %v312
        %vm686 = vcmp.eq.s32.totalorder %v480, %v312
        %vm687 = vcmp.eq.s32.totalorder %v487, %v312
        %vm688 = vcmp.eq.s32.totalorder %v494, %v312
        %vm689 = vcmp.eq.s32.totalorder %v501, %v312
        %vm690 = vcmp.eq.s32.totalorder %v508, %v312
        %vm691 = vcmp.eq.s32.totalorder %v515, %v312
        %vm692 = vcmp.eq.s32.totalorder %v522, %v312
        %vm693 = vcmp.eq.s32.totalorder %v529, %v312
        %vm694 = vcmp.eq.s32.totalorder %v536, %v312
        %vm695 = vcmp.eq.s32.totalorder %v543, %v312
        %vm696 = vcmp.eq.s32.totalorder %v550, %v312
        %vm697 = vcmp.eq.s32.totalorder %v557, %v312
        %vm698 = vcmp.eq.s32.totalorder %v564, %v312
        %vm699 = vcmp.eq.s32.totalorder %v571, %v312
        %vm700 = vcmp.eq.s32.totalorder %v578, %v312
        %vm701 = vcmp.eq.s32.totalorder %v585, %v312
        %vm702 = vcmp.eq.s32.totalorder %v592, %v312
        %vm703 = vcmp.eq.s32.totalorder %v599, %v312
        %vm704 = vcmp.eq.s32.totalorder %v606, %v312
        %vm705 = vcmp.eq.s32.totalorder %v613, %v312
        %vm706 = vcmp.eq.s32.totalorder %v620, %v312
        %vm707 = vcmp.eq.s32.totalorder %v627, %v312
        %vm708 = vcmp.eq.s32.totalorder %v634, %v312
        %vm709 = vcmp.eq.s32.totalorder %v641, %v312
        %vm710 = vcmp.eq.s32.totalorder %v648, %v312
        %vm711 = vcmp.eq.s32.totalorder %v655, %v312
        %vm712 = vcmp.eq.s32.totalorder %v662, %v312
        %v713 = vsel %vm663, 1, 0
        %v714 = vsel %vm664, 1, 0
        %v715 = vsel %vm665, 1, 0
        %v716 = vsel %vm666, 1, 0
        %v717 = vsel %vm667, 1, 0
        %v718 = vsel %vm668, 1, 0
        %v719 = vsel %vm669, 1, 0
        %v720 = vsel %vm670, 1, 0
        %v721 = vsel %vm671, 1, 0
        %v722 = vsel %vm672, 1, 0
        %v723 = vsel %vm673, 1, 0
        %v724 = vsel %vm674, 1, 0
        %v725 = vsel %vm675, 1, 0
        %v726 = vsel %vm676, 1, 0
        %v727 = vsel %vm677, 1, 0
        %v728 = vsel %vm678, 1, 0
        %v729 = vsel %vm679, 1, 0
        %v730 = vsel %vm680, 1, 0
        %v731 = vsel %vm681, 1, 0
        %v732 = vsel %vm682, 1, 0
        %v733 = vsel %vm683, 1, 0
        %v734 = vsel %vm684, 1, 0
        %v735 = vsel %vm685, 1, 0
        %v736 = vsel %vm686, 1, 0
        %v737 = vsel %vm687, 1, 0
        %v738 = vsel %vm688, 1, 0
        %v739 = vsel %vm689, 1, 0
        %v740 = vsel %vm690, 1, 0
        %v741 = vsel %vm691, 1, 0
        %v742 = vsel %vm692, 1, 0
        %v743 = vsel %vm693, 1, 0
        %v744 = vsel %vm694, 1, 0
        %v745 = vsel %vm695, 1, 0
        %v746 = vsel %vm696, 1, 0
        %v747 = vsel %vm697, 1, 0
        %v748 = vsel %vm698, 1, 0
        %v749 = vsel %vm699, 1, 0
        %v750 = vsel %vm700, 1, 0
        %v751 = vsel %vm701, 1, 0
        %v752 = vsel %vm702, 1, 0
        %v753 = vsel %vm703, 1, 0
        %v754 = vsel %vm704, 1, 0
        %v755 = vsel %vm705, 1, 0
        %v756 = vsel %vm706, 1, 0
        %v757 = vsel %vm707, 1, 0
        %v758 = vsel %vm708, 1, 0
        %v759 = vsel %vm709, 1, 0
        %v760 = vsel %vm710, 1, 0
        %v761 = vsel %vm711, 1, 0
        %v762 = vsel %vm712, 1, 0
        %v763 = vcvt.s32.f32 %v713
        %v764 = vcvt.s32.f32 %v714
        %v765 = vcvt.s32.f32 %v715
        %v766 = vcvt.s32.f32 %v716
        %v767 = vcvt.s32.f32 %v717
        %v768 = vcvt.s32.f32 %v718
        %v769 = vcvt.s32.f32 %v719
        %v770 = vcvt.s32.f32 %v720
        %v771 = vcvt.s32.f32 %v721
        %v772 = vcvt.s32.f32 %v722
        %v773 = vcvt.s32.f32 %v723
        %v774 = vcvt.s32.f32 %v724
        %v775 = vcvt.s32.f32 %v725
        %v776 = vcvt.s32.f32 %v726
        %v777 = vcvt.s32.f32 %v727
        %v778 = vcvt.s32.f32 %v728
        %v779 = vcvt.s32.f32 %v729
        %v780 = vcvt.s32.f32 %v730
        %v781 = vcvt.s32.f32 %v731
        %v782 = vcvt.s32.f32 %v732
        %v783 = vcvt.s32.f32 %v733
        %v784 = vcvt.s32.f32 %v734
        %v785 = vcvt.s32.f32 %v735
        %v786 = vcvt.s32.f32 %v736
        %v787 = vcvt.s32.f32 %v737
        %v788 = vcvt.s32.f32 %v738
        %v789 = vcvt.s32.f32 %v739
        %v790 = vcvt.s32.f32 %v740
        %v791 = vcvt.s32.f32 %v741
        %v792 = vcvt.s32.f32 %v742
        %v793 = vcvt.s32.f32 %v743
        %v794 = vcvt.s32.f32 %v744
        %v795 = vcvt.s32.f32 %v745
        %v796 = vcvt.s32.f32 %v746
        %v797 = vcvt.s32.f32 %v747
        %v798 = vcvt.s32.f32 %v748
        %v799 = vcvt.s32.f32 %v749
        %v800 = vcvt.s32.f32 %v750
        %v801 = vcvt.s32.f32 %v751
        %v802 = vcvt.s32.f32 %v752
        %v803 = vcvt.s32.f32 %v753
        %v804 = vcvt.s32.f32 %v754
        %v805 = vcvt.s32.f32 %v755
        %v806 = vcvt.s32.f32 %v756
        %v807 = vcvt.s32.f32 %v757
        %v808 = vcvt.s32.f32 %v758
        %v809 = vcvt.s32.f32 %v759
        %v810 = vcvt.s32.f32 %v760
        %v811 = vcvt.s32.f32 %v761
        %v812 = vcvt.s32.f32 %v762
        %v813 = vld [vmem:[%s1] sm:$0xff]
        %v814 = vld [vmem:[%s1 + $0x8] sm:$0xff]
        %v815 = vld [vmem:[%s1 + $0x10] sm:$0xff]
        %v816 = vld [vmem:[%s1 + $0x18] sm:$0xff]
        %v817 = vld [vmem:[%s1 + $0x20] sm:$0xff]
        %v818 = vld [vmem:[%s1 + $0x28] sm:$0xff]
        %v819 = vld [vmem:[%s1 + $0x30] sm:$0xff]
        %v820 = vld [vmem:[%s1 + $0x38] sm:$0xff]
        %v821 = vld [vmem:[%s1 + $0x40] sm:$0xff]
        %v822 = vld [vmem:[%s1 + $0x48] sm:$0xff]
        %v823 = vld [vmem:[%s1 + $0x50] sm:$0xff]
        %v824 = vld [vmem:[%s1 + $0x58] sm:$0xff]
        %v825 = vld [vmem:[%s1 + $0x60] sm:$0xf]
        %vm826 = vcmask 818176
        %v828 = vsel %vm826, %v763, 0
        %v831 = vsel %vm826, %v764, 0
        %v834 = vsel %vm826, %v765, 0
        %v837 = vsel %vm826, %v766, 0
        %v840 = vsel %vm826, %v767, 0
        %v843 = vsel %vm826, %v768, 0
        %v846 = vsel %vm826, %v769, 0
        %v849 = vsel %vm826, %v770, 0
        %v852 = vsel %vm826, %v771, 0
        %v855 = vsel %vm826, %v772, 0
        %v858 = vsel %vm826, %v773, 0
        %v861 = vsel %vm826, %v774, 0
        %v864 = vsel %vm826, %v775, 0
        %v867 = vsel %vm826, %v776, 0
        %v870 = vsel %vm826, %v777, 0
        %v873 = vsel %vm826, %v778, 0
        %v876 = vsel %vm826, %v779, 0
        %v879 = vsel %vm826, %v780, 0
        %v882 = vsel %vm826, %v781, 0
        %v885 = vsel %vm826, %v782, 0
        %v888 = vsel %vm826, %v783, 0
        %v891 = vsel %vm826, %v784, 0
        %v894 = vsel %vm826, %v785, 0
        %v897 = vsel %vm826, %v786, 0
        %v900 = vsel %vm826, %v787, 0
        %v903 = vsel %vm826, %v788, 0
        %v906 = vsel %vm826, %v789, 0
        %v909 = vsel %vm826, %v790, 0
        %v912 = vsel %vm826, %v791, 0
        %v915 = vsel %vm826, %v792, 0
        %v918 = vsel %vm826, %v793, 0
        %v921 = vsel %vm826, %v794, 0
        %v924 = vsel %vm826, %v795, 0
        %v927 = vsel %vm826, %v796, 0
        %v930 = vsel %vm826, %v797, 0
        %v933 = vsel %vm826, %v798, 0
        %v936 = vsel %vm826, %v799, 0
        %v939 = vsel %vm826, %v800, 0
        %v942 = vsel %vm826, %v801, 0
        %v945 = vsel %vm826, %v802, 0
        %v948 = vsel %vm826, %v803, 0
        %v951 = vsel %vm826, %v804, 0
        %v954 = vsel %vm826, %v805, 0
        %v957 = vsel %vm826, %v806, 0
        %v960 = vsel %vm826, %v807, 0
        %v963 = vsel %vm826, %v808, 0
        %v966 = vsel %vm826, %v809, 0
        %v969 = vsel %vm826, %v810, 0
        %v972 = vsel %vm826, %v811, 0
        %v975 = vsel %vm826, %v812, 0
        %vm977 = vcmask 1043456
        %v979 = vsel %vm977, %v825, 0
        %981 = vmatprep.subr.mxu0 0.0
        %982 = vmatpush1.msra.mxu0 %v813
        %983 = vmatprep.subr.mxu0 0.0
        %984 = vmatpush1.msra.mxu0 %v814
        %985 = vmatprep.subr.mxu0 0.0
        %986 = vmatpush1.msra.mxu0 %v815
        %987 = vmatprep.subr.mxu0 0.0
        %988 = vmatpush1.msra.mxu0 %v816
        %989 = vmatprep.subr.mxu0 0.0
        %990 = vmatpush1.msra.mxu0 %v817
        %991 = vmatprep.subr.mxu0 0.0
        %992 = vmatpush1.msra.mxu0 %v818
        %993 = vmatprep.subr.mxu0 0.0
        %994 = vmatpush1.msra.mxu0 %v819
        %995 = vmatprep.subr.mxu0 0.0
        %996 = vmatpush1.msra.mxu0 %v820
        %997 = vmatprep.subr.mxu0 0.0
        %998 = vmatpush1.msra.mxu0 %v821
        %999 = vmatprep.subr.mxu0 0.0
        %1000 = vmatpush1.msra.mxu0 %v822
        %1001 = vmatprep.subr.mxu0 0.0
        %1002 = vmatpush1.msra.mxu0 %v823
        %1003 = vmatprep.subr.mxu0 0.0
        %1004 = vmatpush1.msra.mxu0 %v824
        %1005 = vmatprep.subr.mxu0 0.0
        %1006 = vmatpush1.msra.mxu0 %v979
        %1007 = vmatprep.subr.mxu0 0.0
        %1008 = vmatpush1.msra.mxu0 0.0
        %1009 = vmatprep.subr.mxu0 0.0
        %1010 = vmatpush1.msra.mxu0 0.0
        %1011 = vmatprep.subr.mxu0 0.0
        %1012 = vmatpush1.msra.mxu0 0.0
        %1013 = vmatprep.subr.mxu0 0.0
        %1014 = vmatpush1.msra.mxu0 0.0
        %1015 = vmatprep.subr.mxu0 0.0
        %1016 = vmatpush1.msra.mxu0 0.0
        %1017 = vmatprep.subr.mxu0 0.0
        %1018 = vmatpush1.msra.mxu0 0.0
        %1019 = vmatprep.subr.mxu0 0.0
        %1020 = vmatpush1.msra.mxu0 0.0
        %1021 = vmatprep.subr.mxu0 0.0
        %1022 = vmatpush1.msra.mxu0 0.0
        %1023 = vmatprep.subr.mxu0 0.0
        %1024 = vmatpush1.msra.mxu0 0.0
        %1025 = vmatprep.subr.mxu0 0.0
        %1026 = vmatpush1.msra.mxu0 0.0
        %1027 = vmatprep.subr.mxu0 0.0
        %1028 = vmatpush1.msra.mxu0 0.0
        %1029 = vmatprep.subr.mxu0 0.0
        %1030 = vmatpush1.msra.mxu0 0.0
        %1031 = vmatprep.subr.mxu0 0.0
        %1032 = vmatpush1.msra.mxu0 0.0
        %1033 = vmatprep.subr.mxu0 0.0
        %1034 = vmatpush1.msra.mxu0 0.0
        %1035 = vmatprep.subr.mxu0 0.0
        %1036 = vmatpush1.msra.mxu0 0.0
        %1037 = vmatprep.subr.mxu0 0.0
        %1038 = vmatpush1.msra.mxu0 0.0
        %1039 = vmatprep.subr.mxu0 0.0
        %1040 = vmatpush1.msra.mxu0 0.0
        %1041 = vmatprep.subr.mxu0 0.0
        %1042 = vmatpush1.msra.mxu0 0.0
        %1043 = vmatprep.subr.mxu0 0.0
        %1044 = vmatpush1.msra.mxu0 0.0
        %1045 = vmatprep.mubr.f32.mxu0 0.0
        %1046 = vmatmul.mubr.f32.gmra.mrb[0].mxu0 %v828
        %v1047 = vpop.f32.mrb[0].mxu0
        %v1048 = vadd.f32 0.0, %v1047
        %v1049 = vpop.f32.mrb[0].mxu0
        %1050 = vmatprep.mubr.f32.mxu0 0.0
        %1051 = vmatmul.mubr.f32.gmra.mrb[0].mxu0 %v831
        %v1052 = vpop.f32.mrb[0].mxu0
        %v1053 = vadd.f32 0.0, %v1052
        %v1054 = vpop.f32.mrb[0].mxu0
        %1055 = vmatprep.mubr.f32.mxu0 0.0
        %1056 = vmatmul.mubr.f32.gmra.mrb[0].mxu0 %v834
        %v1057 = vpop.f32.mrb[0].mxu0
        %v1058 = vadd.f32 0.0, %v1057
        %v1059 = vpop.f32.mrb[0].mxu0
        %1060 = vmatprep.mubr.f32.mxu0 0.0
        %1061 = vmatmul.mubr.f32.gmra.mrb[0].mxu0 %v837
        %v1062 = vpop.f32.mrb[0].mxu0
        %v1063 = vadd.f32 0.0, %v1062
        %v1064 = vpop.f32.mrb[0].mxu0
        %1065 = vmatprep.mubr.f32.mxu0 0.0
        %1066 = vmatmul.mubr.f32.gmra.mrb[0].mxu0 %v840
        %v1067 = vpop.f32.mrb[0].mxu0
        %v1068 = vadd.f32 0.0, %v1067
        %v1069 = vpop.f32.mrb[0].mxu0
        %1070 = vmatprep.mubr.f32.mxu0 0.0
        %1071 = vmatmul.mubr.f32.gmra.mrb[0].mxu0 %v843
        %v1072 = vpop.f32.mrb[0].mxu0
        %v1073 = vadd.f32 0.0, %v1072
        %v1074 = vpop.f32.mrb[0].mxu0
        %1075 = vmatprep.mubr.f32.mxu0 0.0
        %1076 = vmatmul.mubr.f32.gmra.mrb[0].mxu0 %v846
        %v1077 = vpop.f32.mrb[0].mxu0
        %v1078 = vadd.f32 0.0, %v1077
        %v1079 = vpop.f32.mrb[0].mxu0
        %1080 = vmatprep.mubr.f32.mxu0 0.0
        %1081 = vmatmul.mubr.f32.gmra.mrb[0].mxu0 %v849
        %v1082 = vpop.f32.mrb[0].mxu0
        %v1083 = vadd.f32 0.0, %v1082
        %v1084 = vpop.f32.mrb[0].mxu0
        %1085 = vmatprep.mubr.f32.mxu0 0.0
        %1086 = vmatmul.mubr.f32.gmra.mrb[0].mxu0 %v852
        %v1087 = vpop.f32.mrb[0].mxu0
        %v1088 = vadd.f32 0.0, %v1087
        %v1089 = vpop.f32.mrb[0].mxu0
        %1090 = vmatprep.mubr.f32.mxu0 0.0
        %1091 = vmatmul.mubr.f32.gmra.mrb[0].mxu0 %v855
        %v1092 = vpop.f32.mrb[0].mxu0
        %v1093 = vadd.f32 0.0, %v1092
        %v1094 = vpop.f32.mrb[0].mxu0
        %1095 = vmatprep.mubr.f32.mxu0 0.0
        %1096 = vmatmul.mubr.f32.gmra.mrb[0].mxu0 %v858
        %v1097 = vpop.f32.mrb[0].mxu0
        %v1098 = vadd.f32 0.0, %v1097
        %v1099 = vpop.f32.mrb[0].mxu0
        %1100 = vmatprep.mubr.f32.mxu0 0.0
        %1101 = vmatmul.mubr.f32.gmra.mrb[0].mxu0 %v861
        %v1102 = vpop.f32.mrb[0].mxu0
        %v1103 = vadd.f32 0.0, %v1102
        %v1104 = vpop.f32.mrb[0].mxu0
        %1105 = vmatprep.mubr.f32.mxu0 0.0
        %1106 = vmatmul.mubr.f32.gmra.mrb[0].mxu0 %v864
        %v1107 = vpop.f32.mrb[0].mxu0
        %v1108 = vadd.f32 0.0, %v1107
        %v1109 = vpop.f32.mrb[0].mxu0
        %1110 = vmatprep.mubr.f32.mxu0 0.0
        %1111 = vmatmul.mubr.f32.gmra.mrb[0].mxu0 %v867
        %v1112 = vpop.f32.mrb[0].mxu0
        %v1113 = vadd.f32 0.0, %v1112
        %v1114 = vpop.f32.mrb[0].mxu0
        %1115 = vmatprep.mubr.f32.mxu0 0.0
        %1116 = vmatmul.mubr.f32.gmra.mrb[0].mxu0 %v870
        %v1117 = vpop.f32.mrb[0].mxu0
        %v1118 = vadd.f32 0.0, %v1117
        %v1119 = vpop.f32.mrb[0].mxu0
        %1120 = vmatprep.mubr.f32.mxu0 0.0
        %1121 = vmatmul.mubr.f32.gmra.mrb[0].mxu0 %v873
        %v1122 = vpop.f32.mrb[0].mxu0
        %v1123 = vadd.f32 0.0, %v1122
        %v1124 = vpop.f32.mrb[0].mxu0
        %1125 = vmatprep.mubr.f32.mxu0 0.0
        %1126 = vmatmul.mubr.f32.gmra.mrb[0].mxu0 %v876
        %v1127 = vpop.f32.mrb[0].mxu0
        %v1128 = vadd.f32 0.0, %v1127
        %v1129 = vpop.f32.mrb[0].mxu0
        %1130 = vmatprep.mubr.f32.mxu0 0.0
        %1131 = vmatmul.mubr.f32.gmra.mrb[0].mxu0 %v879
        %v1132 = vpop.f32.mrb[0].mxu0
        %v1133 = vadd.f32 0.0, %v1132
        %v1134 = vpop.f32.mrb[0].mxu0
        %1135 = vmatprep.mubr.f32.mxu0 0.0
        %1136 = vmatmul.mubr.f32.gmra.mrb[0].mxu0 %v882
        %v1137 = vpop.f32.mrb[0].mxu0
        %v1138 = vadd.f32 0.0, %v1137
        %v1139 = vpop.f32.mrb[0].mxu0
        %1140 = vmatprep.mubr.f32.mxu0 0.0
        %1141 = vmatmul.mubr.f32.gmra.mrb[0].mxu0 %v885
        %v1142 = vpop.f32.mrb[0].mxu0
        %v1143 = vadd.f32 0.0, %v1142
        %v1144 = vpop.f32.mrb[0].mxu0
        %1145 = vmatprep.mubr.f32.mxu0 0.0
        %1146 = vmatmul.mubr.f32.gmra.mrb[0].mxu0 %v888
        %v1147 = vpop.f32.mrb[0].mxu0
        %v1148 = vadd.f32 0.0, %v1147
        %v1149 = vpop.f32.mrb[0].mxu0
        %1150 = vmatprep.mubr.f32.mxu0 0.0
        %1151 = vmatmul.mubr.f32.gmra.mrb[0].mxu0 %v891
        %v1152 = vpop.f32.mrb[0].mxu0
        %v1153 = vadd.f32 0.0, %v1152
        %v1154 = vpop.f32.mrb[0].mxu0
        %1155 = vmatprep.mubr.f32.mxu0 0.0
        %1156 = vmatmul.mubr.f32.gmra.mrb[0].mxu0 %v894
        %v1157 = vpop.f32.mrb[0].mxu0
        %v1158 = vadd.f32 0.0, %v1157
        %v1159 = vpop.f32.mrb[0].mxu0
        %1160 = vmatprep.mubr.f32.mxu0 0.0
        %1161 = vmatmul.mubr.f32.gmra.mrb[0].mxu0 %v897
        %v1162 = vpop.f32.mrb[0].mxu0
        %v1163 = vadd.f32 0.0, %v1162
        %v1164 = vpop.f32.mrb[0].mxu0
        %1165 = vmatprep.mubr.f32.mxu0 0.0
        %1166 = vmatmul.mubr.f32.gmra.mrb[0].mxu0 %v900
        %v1167 = vpop.f32.mrb[0].mxu0
        %v1168 = vadd.f32 0.0, %v1167
        %v1169 = vpop.f32.mrb[0].mxu0
        %1170 = vmatprep.mubr.f32.mxu0 0.0
        %1171 = vmatmul.mubr.f32.gmra.mrb[0].mxu0 %v903
        %v1172 = vpop.f32.mrb[0].mxu0
        %v1173 = vadd.f32 0.0, %v1172
        %v1174 = vpop.f32.mrb[0].mxu0
        %1175 = vmatprep.mubr.f32.mxu0 0.0
        %1176 = vmatmul.mubr.f32.gmra.mrb[0].mxu0 %v906
        %v1177 = vpop.f32.mrb[0].mxu0
        %v1178 = vadd.f32 0.0, %v1177
        %v1179 = vpop.f32.mrb[0].mxu0
        %1180 = vmatprep.mubr.f32.mxu0 0.0
        %1181 = vmatmul.mubr.f32.gmra.mrb[0].mxu0 %v909
        %v1182 = vpop.f32.mrb[0].mxu0
        %v1183 = vadd.f32 0.0, %v1182
        %v1184 = vpop.f32.mrb[0].mxu0
        %1185 = vmatprep.mubr.f32.mxu0 0.0
        %1186 = vmatmul.mubr.f32.gmra.mrb[0].mxu0 %v912
        %v1187 = vpop.f32.mrb[0].mxu0
        %v1188 = vadd.f32 0.0, %v1187
        %v1189 = vpop.f32.mrb[0].mxu0
        %1190 = vmatprep.mubr.f32.mxu0 0.0
        %1191 = vmatmul.mubr.f32.gmra.mrb[0].mxu0 %v915
        %v1192 = vpop.f32.mrb[0].mxu0
        %v1193 = vadd.f32 0.0, %v1192
        %v1194 = vpop.f32.mrb[0].mxu0
        %1195 = vmatprep.mubr.f32.mxu0 0.0
        %1196 = vmatmul.mubr.f32.gmra.mrb[0].mxu0 %v918
        %v1197 = vpop.f32.mrb[0].mxu0
        %v1198 = vadd.f32 0.0, %v1197
        %v1199 = vpop.f32.mrb[0].mxu0
        %1200 = vmatprep.mubr.f32.mxu0 0.0
        %1201 = vmatmul.mubr.f32.gmra.mrb[0].mxu0 %v921
        %v1202 = vpop.f32.mrb[0].mxu0
        %v1203 = vadd.f32 0.0, %v1202
        %v1204 = vpop.f32.mrb[0].mxu0
        %1205 = vmatprep.mubr.f32.mxu0 0.0
        %1206 = vmatmul.mubr.f32.gmra.mrb[0].mxu0 %v924
        %v1207 = vpop.f32.mrb[0].mxu0
        %v1208 = vadd.f32 0.0, %v1207
        %v1209 = vpop.f32.mrb[0].mxu0
        %1210 = vmatprep.mubr.f32.mxu0 0.0
        %1211 = vmatmul.mubr.f32.gmra.mrb[0].mxu0 %v927
        %v1212 = vpop.f32.mrb[0].mxu0
        %v1213 = vadd.f32 0.0, %v1212
        %v1214 = vpop.f32.mrb[0].mxu0
        %1215 = vmatprep.mubr.f32.mxu0 0.0
        %1216 = vmatmul.mubr.f32.gmra.mrb[0].mxu0 %v930
        %v1217 = vpop.f32.mrb[0].mxu0
        %v1218 = vadd.f32 0.0, %v1217
        %v1219 = vpop.f32.mrb[0].mxu0
        %1220 = vmatprep.mubr.f32.mxu0 0.0
        %1221 = vmatmul.mubr.f32.gmra.mrb[0].mxu0 %v933
        %v1222 = vpop.f32.mrb[0].mxu0
        %v1223 = vadd.f32 0.0, %v1222
        %v1224 = vpop.f32.mrb[0].mxu0
        %1225 = vmatprep.mubr.f32.mxu0 0.0
        %1226 = vmatmul.mubr.f32.gmra.mrb[0].mxu0 %v936
        %v1227 = vpop.f32.mrb[0].mxu0
        %v1228 = vadd.f32 0.0, %v1227
        %v1229 = vpop.f32.mrb[0].mxu0
        %1230 = vmatprep.mubr.f32.mxu0 0.0
        %1231 = vmatmul.mubr.f32.gmra.mrb[0].mxu0 %v939
        %v1232 = vpop.f32.mrb[0].mxu0
        %v1233 = vadd.f32 0.0, %v1232
        %v1234 = vpop.f32.mrb[0].mxu0
        %1235 = vmatprep.mubr.f32.mxu0 0.0
        %1236 = vmatmul.mubr.f32.gmra.mrb[0].mxu0 %v942
        %v1237 = vpop.f32.mrb[0].mxu0
        %v1238 = vadd.f32 0.0, %v1237
        %v1239 = vpop.f32.mrb[0].mxu0
        %1240 = vmatprep.mubr.f32.mxu0 0.0
        %1241 = vmatmul.mubr.f32.gmra.mrb[0].mxu0 %v945
        %v1242 = vpop.f32.mrb[0].mxu0
        %v1243 = vadd.f32 0.0, %v1242
        %v1244 = vpop.f32.mrb[0].mxu0
        %1245 = vmatprep.mubr.f32.mxu0 0.0
        %1246 = vmatmul.mubr.f32.gmra.mrb[0].mxu0 %v948
        %v1247 = vpop.f32.mrb[0].mxu0
        %v1248 = vadd.f32 0.0, %v1247
        %v1249 = vpop.f32.mrb[0].mxu0
        %1250 = vmatprep.mubr.f32.mxu0 0.0
        %1251 = vmatmul.mubr.f32.gmra.mrb[0].mxu0 %v951
        %v1252 = vpop.f32.mrb[0].mxu0
        %v1253 = vadd.f32 0.0, %v1252
        %v1254 = vpop.f32.mrb[0].mxu0
        %1255 = vmatprep.mubr.f32.mxu0 0.0
        %1256 = vmatmul.mubr.f32.gmra.mrb[0].mxu0 %v954
        %v1257 = vpop.f32.mrb[0].mxu0
        %v1258 = vadd.f32 0.0, %v1257
        %v1259 = vpop.f32.mrb[0].mxu0
        %1260 = vmatprep.mubr.f32.mxu0 0.0
        %1261 = vmatmul.mubr.f32.gmra.mrb[0].mxu0 %v957
        %v1262 = vpop.f32.mrb[0].mxu0
        %v1263 = vadd.f32 0.0, %v1262
        %v1264 = vpop.f32.mrb[0].mxu0
        %1265 = vmatprep.mubr.f32.mxu0 0.0
        %1266 = vmatmul.mubr.f32.gmra.mrb[0].mxu0 %v960
        %v1267 = vpop.f32.mrb[0].mxu0
        %v1268 = vadd.f32 0.0, %v1267
        %v1269 = vpop.f32.mrb[0].mxu0
        %1270 = vmatprep.mubr.f32.mxu0 0.0
        %1271 = vmatmul.mubr.f32.gmra.mrb[0].mxu0 %v963
        %v1272 = vpop.f32.mrb[0].mxu0
        %v1273 = vadd.f32 0.0, %v1272
        %v1274 = vpop.f32.mrb[0].mxu0
        %1275 = vmatprep.mubr.f32.mxu0 0.0
        %1276 = vmatmul.mubr.f32.gmra.mrb[0].mxu0 %v966
        %v1277 = vpop.f32.mrb[0].mxu0
        %v1278 = vadd.f32 0.0, %v1277
        %v1279 = vpop.f32.mrb[0].mxu0
        %1280 = vmatprep.mubr.f32.mxu0 0.0
        %1281 = vmatmul.mubr.f32.gmra.mrb[0].mxu0 %v969
        %v1282 = vpop.f32.mrb[0].mxu0
        %v1283 = vadd.f32 0.0, %v1282
        %v1284 = vpop.f32.mrb[0].mxu0
        %1285 = vmatprep.mubr.f32.mxu0 0.0
        %1286 = vmatmul.mubr.f32.gmra.mrb[0].mxu0 %v972
        %v1287 = vpop.f32.mrb[0].mxu0
        %v1288 = vadd.f32 0.0, %v1287
        %v1289 = vpop.f32.mrb[0].mxu0
        %1290 = vmatprep.mubr.f32.mxu0 0.0
        %1291 = vmatmul.mubr.f32.gmra.mrb[0].mxu0 %v975
        %v1292 = vpop.f32.mrb[0].mxu0
        %v1293 = vadd.f32 0.0, %v1292
        %v1294 = vpop.f32.mrb[0].mxu0
        %1295 = vdwg.mxu0
        %1344 = vrot.lane.b32.xlu0 %v1053, 32
        %v1345 = vpop.permute.xlu0 %1344
        %1346 = vrot.lane.b32.xlu0 %v1058, 32
        %v1347 = vpop.permute.xlu0 %1346
        %1348 = vrot.lane.b32.xlu0 %v1063, 32
        %v1349 = vpop.permute.xlu0 %1348
        %1350 = vrot.lane.b32.xlu0 %v1068, 32
        %v1351 = vpop.permute.xlu0 %1350
        %1352 = vrot.lane.b32.xlu0 %v1073, 32
        %v1353 = vpop.permute.xlu0 %1352
        %1354 = vrot.lane.b32.xlu0 %v1078, 32
        %v1355 = vpop.permute.xlu0 %1354
        %1356 = vrot.lane.b32.xlu0 %v1083, 32
        %v1357 = vpop.permute.xlu0 %1356
        %1358 = vrot.lane.b32.xlu0 %v1088, 32
        %v1359 = vpop.permute.xlu0 %1358
        %1360 = vrot.lane.b32.xlu0 %v1093, 32
        %v1361 = vpop.permute.xlu0 %1360
        %1362 = vrot.lane.b32.xlu0 %v1098, 32
        %v1363 = vpop.permute.xlu0 %1362
        %1364 = vrot.lane.b32.xlu0 %v1103, 32
        %v1365 = vpop.permute.xlu0 %1364
        %1366 = vrot.lane.b32.xlu0 %v1108, 32
        %v1367 = vpop.permute.xlu0 %1366
        %1368 = vrot.lane.b32.xlu0 %v1113, 32
        %v1369 = vpop.permute.xlu0 %1368
        %1370 = vrot.lane.b32.xlu0 %v1118, 32
        %v1371 = vpop.permute.xlu0 %1370
        %1372 = vrot.lane.b32.xlu0 %v1123, 32
        %v1373 = vpop.permute.xlu0 %1372
        %1374 = vrot.lane.b32.xlu0 %v1128, 32
        %v1375 = vpop.permute.xlu0 %1374
        %1376 = vrot.lane.b32.xlu0 %v1133, 32
        %v1377 = vpop.permute.xlu0 %1376
        %1378 = vrot.lane.b32.xlu0 %v1138, 32
        %v1379 = vpop.permute.xlu0 %1378
        %1380 = vrot.lane.b32.xlu0 %v1143, 32
        %v1381 = vpop.permute.xlu0 %1380
        %1382 = vrot.lane.b32.xlu0 %v1148, 32
        %v1383 = vpop.permute.xlu0 %1382
        %1384 = vrot.lane.b32.xlu0 %v1153, 32
        %v1385 = vpop.permute.xlu0 %1384
        %1386 = vrot.lane.b32.xlu0 %v1158, 32
        %v1387 = vpop.permute.xlu0 %1386
        %1388 = vrot.lane.b32.xlu0 %v1163, 32
        %v1389 = vpop.permute.xlu0 %1388
        %1390 = vrot.lane.b32.xlu0 %v1168, 32
        %v1391 = vpop.permute.xlu0 %1390
        %1392 = vrot.lane.b32.xlu0 %v1173, 32
        %v1393 = vpop.permute.xlu0 %1392
        %1394 = vrot.lane.b32.xlu0 %v1178, 32
        %v1395 = vpop.permute.xlu0 %1394
        %1396 = vrot.lane.b32.xlu0 %v1183, 32
        %v1397 = vpop.permute.xlu0 %1396
        %1398 = vrot.lane.b32.xlu0 %v1188, 32
        %v1399 = vpop.permute.xlu0 %1398
        %1400 = vrot.lane.b32.xlu0 %v1193, 32
        %v1401 = vpop.permute.xlu0 %1400
        %1402 = vrot.lane.b32.xlu0 %v1198, 32
        %v1403 = vpop.permute.xlu0 %1402
        %1404 = vrot.lane.b32.xlu0 %v1203, 32
        %v1405 = vpop.permute.xlu0 %1404
        %1406 = vrot.lane.b32.xlu0 %v1208, 32
        %v1407 = vpop.permute.xlu0 %1406
        %1408 = vrot.lane.b32.xlu0 %v1213, 32
        %v1409 = vpop.permute.xlu0 %1408
        %1410 = vrot.lane.b32.xlu0 %v1218, 32
        %v1411 = vpop.permute.xlu0 %1410
        %1412 = vrot.lane.b32.xlu0 %v1223, 32
        %v1413 = vpop.permute.xlu0 %1412
        %1414 = vrot.lane.b32.xlu0 %v1228, 32
        %v1415 = vpop.permute.xlu0 %1414
        %1416 = vrot.lane.b32.xlu0 %v1233, 32
        %v1417 = vpop.permute.xlu0 %1416
        %1418 = vrot.lane.b32.xlu0 %v1238, 32
        %v1419 = vpop.permute.xlu0 %1418
        %1420 = vrot.lane.b32.xlu0 %v1243, 32
        %v1421 = vpop.permute.xlu0 %1420
        %1422 = vrot.lane.b32.xlu0 %v1248, 32
        %v1423 = vpop.permute.xlu0 %1422
        %1424 = vrot.lane.b32.xlu0 %v1253, 32
        %v1425 = vpop.permute.xlu0 %1424
        %1426 = vrot.lane.b32.xlu0 %v1258, 32
        %v1427 = vpop.permute.xlu0 %1426
        %1428 = vrot.lane.b32.xlu0 %v1263, 32
        %v1429 = vpop.permute.xlu0 %1428
        %1430 = vrot.lane.b32.xlu0 %v1268, 32
        %v1431 = vpop.permute.xlu0 %1430
        %1432 = vrot.lane.b32.xlu0 %v1273, 32
        %v1433 = vpop.permute.xlu0 %1432
        %1434 = vrot.lane.b32.xlu0 %v1278, 32
        %v1435 = vpop.permute.xlu0 %1434
        %1436 = vrot.lane.b32.xlu0 %v1283, 32
        %v1437 = vpop.permute.xlu0 %1436
        %1438 = vrot.lane.b32.xlu0 %v1288, 32
        %v1439 = vpop.permute.xlu0 %1438
        %1489 = vrot.lane.b32.xlu0 %v1058, 64
        %v1490 = vpop.permute.xlu0 %1489
        %1491 = vrot.lane.b32.xlu0 %v1063, 64
        %v1492 = vpop.permute.xlu0 %1491
        %1493 = vrot.lane.b32.xlu0 %v1068, 64
        %v1494 = vpop.permute.xlu0 %1493
        %1495 = vrot.lane.b32.xlu0 %v1073, 64
        %v1496 = vpop.permute.xlu0 %1495
        %1497 = vrot.lane.b32.xlu0 %v1078, 64
        %v1498 = vpop.permute.xlu0 %1497
        %1499 = vrot.lane.b32.xlu0 %v1083, 64
        %v1500 = vpop.permute.xlu0 %1499
        %1501 = vrot.lane.b32.xlu0 %v1088, 64
        %v1502 = vpop.permute.xlu0 %1501
        %1503 = vrot.lane.b32.xlu0 %v1093, 64
        %v1504 = vpop.permute.xlu0 %1503
        %1505 = vrot.lane.b32.xlu0 %v1098, 64
        %v1506 = vpop.permute.xlu0 %1505
        %1507 = vrot.lane.b32.xlu0 %v1103, 64
        %v1508 = vpop.permute.xlu0 %1507
        %1509 = vrot.lane.b32.xlu0 %v1108, 64
        %v1510 = vpop.permute.xlu0 %1509
        %1511 = vrot.lane.b32.xlu0 %v1113, 64
        %v1512 = vpop.permute.xlu0 %1511
        %1513 = vrot.lane.b32.xlu0 %v1118, 64
        %v1514 = vpop.permute.xlu0 %1513
        %1515 = vrot.lane.b32.xlu0 %v1123, 64
        %v1516 = vpop.permute.xlu0 %1515
        %1517 = vrot.lane.b32.xlu0 %v1128, 64
        %v1518 = vpop.permute.xlu0 %1517
        %1519 = vrot.lane.b32.xlu0 %v1133, 64
        %v1520 = vpop.permute.xlu0 %1519
        %1521 = vrot.lane.b32.xlu0 %v1138, 64
        %v1522 = vpop.permute.xlu0 %1521
        %1523 = vrot.lane.b32.xlu0 %v1143, 64
        %v1524 = vpop.permute.xlu0 %1523
        %1525 = vrot.lane.b32.xlu0 %v1148, 64
        %v1526 = vpop.permute.xlu0 %1525
        %1527 = vrot.lane.b32.xlu0 %v1153, 64
        %v1528 = vpop.permute.xlu0 %1527
        %1529 = vrot.lane.b32.xlu0 %v1158, 64
        %v1530 = vpop.permute.xlu0 %1529
        %1531 = vrot.lane.b32.xlu0 %v1163, 64
        %v1532 = vpop.permute.xlu0 %1531
        %1533 = vrot.lane.b32.xlu0 %v1168, 64
        %v1534 = vpop.permute.xlu0 %1533
        %1535 = vrot.lane.b32.xlu0 %v1173, 64
        %v1536 = vpop.permute.xlu0 %1535
        %1537 = vrot.lane.b32.xlu0 %v1178, 64
        %v1538 = vpop.permute.xlu0 %1537
        %1539 = vrot.lane.b32.xlu0 %v1183, 64
        %v1540 = vpop.permute.xlu0 %1539
        %1541 = vrot.lane.b32.xlu0 %v1188, 64
        %v1542 = vpop.permute.xlu0 %1541
        %1543 = vrot.lane.b32.xlu0 %v1193, 64
        %v1544 = vpop.permute.xlu0 %1543
        %1545 = vrot.lane.b32.xlu0 %v1198, 64
        %v1546 = vpop.permute.xlu0 %1545
        %1547 = vrot.lane.b32.xlu0 %v1203, 64
        %v1548 = vpop.permute.xlu0 %1547
        %1549 = vrot.lane.b32.xlu0 %v1208, 64
        %v1550 = vpop.permute.xlu0 %1549
        %1551 = vrot.lane.b32.xlu0 %v1213, 64
        %v1552 = vpop.permute.xlu0 %1551
        %1553 = vrot.lane.b32.xlu0 %v1218, 64
        %v1554 = vpop.permute.xlu0 %1553
        %1555 = vrot.lane.b32.xlu0 %v1223, 64
        %v1556 = vpop.permute.xlu0 %1555
        %1557 = vrot.lane.b32.xlu0 %v1228, 64
        %v1558 = vpop.permute.xlu0 %1557
        %1559 = vrot.lane.b32.xlu0 %v1233, 64
        %v1560 = vpop.permute.xlu0 %1559
        %1561 = vrot.lane.b32.xlu0 %v1238, 64
        %v1562 = vpop.permute.xlu0 %1561
        %1563 = vrot.lane.b32.xlu0 %v1243, 64
        %v1564 = vpop.permute.xlu0 %1563
        %1565 = vrot.lane.b32.xlu0 %v1248, 64
        %v1566 = vpop.permute.xlu0 %1565
        %1567 = vrot.lane.b32.xlu0 %v1253, 64
        %v1568 = vpop.permute.xlu0 %1567
        %1569 = vrot.lane.b32.xlu0 %v1258, 64
        %v1570 = vpop.permute.xlu0 %1569
        %1571 = vrot.lane.b32.xlu0 %v1263, 64
        %v1572 = vpop.permute.xlu0 %1571
        %1573 = vrot.lane.b32.xlu0 %v1268, 64
        %v1574 = vpop.permute.xlu0 %1573
        %1575 = vrot.lane.b32.xlu0 %v1273, 64
        %v1576 = vpop.permute.xlu0 %1575
        %1577 = vrot.lane.b32.xlu0 %v1278, 64
        %v1578 = vpop.permute.xlu0 %1577
        %1579 = vrot.lane.b32.xlu0 %v1283, 64
        %v1580 = vpop.permute.xlu0 %1579
        %1581 = vrot.lane.b32.xlu0 %v1288, 64
        %v1582 = vpop.permute.xlu0 %1581
        %1583 = vrot.lane.b32.xlu0 %v1293, 64
        %v1584 = vpop.permute.xlu0 %1583
        %vm1633 = vcmask 261120
        %v1634 = vsel %vm1633, %v1048, %v1345
        %v1635 = vsel %vm1633, %v1053, %v1347
        %v1636 = vsel %vm1633, %v1058, %v1349
        %v1637 = vsel %vm1633, %v1063, %v1351
        %v1638 = vsel %vm1633, %v1068, %v1353
        %v1639 = vsel %vm1633, %v1073, %v1355
        %v1640 = vsel %vm1633, %v1078, %v1357
        %v1641 = vsel %vm1633, %v1083, %v1359
        %v1642 = vsel %vm1633, %v1088, %v1361
        %v1643 = vsel %vm1633, %v1093, %v1363
        %v1644 = vsel %vm1633, %v1098, %v1365
        %v1645 = vsel %vm1633, %v1103, %v1367
        %v1646 = vsel %vm1633, %v1108, %v1369
        %v1647 = vsel %vm1633, %v1113, %v1371
        %v1648 = vsel %vm1633, %v1118, %v1373
        %v1649 = vsel %vm1633, %v1123, %v1375
        %v1650 = vsel %vm1633, %v1128, %v1377
        %v1651 = vsel %vm1633, %v1133, %v1379
        %v1652 = vsel %vm1633, %v1138, %v1381
        %v1653 = vsel %vm1633, %v1143, %v1383
        %v1654 = vsel %vm1633, %v1148, %v1385
        %v1655 = vsel %vm1633, %v1153, %v1387
        %v1656 = vsel %vm1633, %v1158, %v1389
        %v1657 = vsel %vm1633, %v1163, %v1391
        %v1658 = vsel %vm1633, %v1168, %v1393
        %v1659 = vsel %vm1633, %v1173, %v1395
        %v1660 = vsel %vm1633, %v1178, %v1397
        %v1661 = vsel %vm1633, %v1183, %v1399
        %v1662 = vsel %vm1633, %v1188, %v1401
        %v1663 = vsel %vm1633, %v1193, %v1403
        %v1664 = vsel %vm1633, %v1198, %v1405
        %v1665 = vsel %vm1633, %v1203, %v1407
        %v1666 = vsel %vm1633, %v1208, %v1409
        %v1667 = vsel %vm1633, %v1213, %v1411
        %v1668 = vsel %vm1633, %v1218, %v1413
        %v1669 = vsel %vm1633, %v1223, %v1415
        %v1670 = vsel %vm1633, %v1228, %v1417
        %v1671 = vsel %vm1633, %v1233, %v1419
        %v1672 = vsel %vm1633, %v1238, %v1421
        %v1673 = vsel %vm1633, %v1243, %v1423
        %v1674 = vsel %vm1633, %v1248, %v1425
        %v1675 = vsel %vm1633, %v1253, %v1427
        %v1676 = vsel %vm1633, %v1258, %v1429
        %v1677 = vsel %vm1633, %v1263, %v1431
        %v1678 = vsel %vm1633, %v1268, %v1433
        %v1679 = vsel %vm1633, %v1273, %v1435
        %v1680 = vsel %vm1633, %v1278, %v1437
        %v1681 = vsel %vm1633, %v1283, %v1439
        %vm1682 = vcmask 523264
        %v1683 = vsel %vm1682, %v1634, %v1490
        %v1684 = vsel %vm1682, %v1635, %v1492
        %v1685 = vsel %vm1682, %v1636, %v1494
        %v1686 = vsel %vm1682, %v1637, %v1496
        %v1687 = vsel %vm1682, %v1638, %v1498
        %v1688 = vsel %vm1682, %v1639, %v1500
        %v1689 = vsel %vm1682, %v1640, %v1502
        %v1690 = vsel %vm1682, %v1641, %v1504
        %v1691 = vsel %vm1682, %v1642, %v1506
        %v1692 = vsel %vm1682, %v1643, %v1508
        %v1693 = vsel %vm1682, %v1644, %v1510
        %v1694 = vsel %vm1682, %v1645, %v1512
        %v1695 = vsel %vm1682, %v1646, %v1514
        %v1696 = vsel %vm1682, %v1647, %v1516
        %v1697 = vsel %vm1682, %v1648, %v1518
        %v1698 = vsel %vm1682, %v1649, %v1520
        %v1699 = vsel %vm1682, %v1650, %v1522
        %v1700 = vsel %vm1682, %v1651, %v1524
        %v1701 = vsel %vm1682, %v1652, %v1526
        %v1702 = vsel %vm1682, %v1653, %v1528
        %v1703 = vsel %vm1682, %v1654, %v1530
        %v1704 = vsel %vm1682, %v1655, %v1532
        %v1705 = vsel %vm1682, %v1656, %v1534
        %v1706 = vsel %vm1682, %v1657, %v1536
        %v1707 = vsel %vm1682, %v1658, %v1538
        %v1708 = vsel %vm1682, %v1659, %v1540
        %v1709 = vsel %vm1682, %v1660, %v1542
        %v1710 = vsel %vm1682, %v1661, %v1544
        %v1711 = vsel %vm1682, %v1662, %v1546
        %v1712 = vsel %vm1682, %v1663, %v1548
        %v1713 = vsel %vm1682, %v1664, %v1550
        %v1714 = vsel %vm1682, %v1665, %v1552
        %v1715 = vsel %vm1682, %v1666, %v1554
        %v1716 = vsel %vm1682, %v1667, %v1556
        %v1717 = vsel %vm1682, %v1668, %v1558
        %v1718 = vsel %vm1682, %v1669, %v1560
        %v1719 = vsel %vm1682, %v1670, %v1562
        %v1720 = vsel %vm1682, %v1671, %v1564
        %v1721 = vsel %vm1682, %v1672, %v1566
        %v1722 = vsel %vm1682, %v1673, %v1568
        %v1723 = vsel %vm1682, %v1674, %v1570
        %v1724 = vsel %vm1682, %v1675, %v1572
        %v1725 = vsel %vm1682, %v1676, %v1574
        %v1726 = vsel %vm1682, %v1677, %v1576
        %v1727 = vsel %vm1682, %v1678, %v1578
        %v1728 = vsel %vm1682, %v1679, %v1580
        %v1729 = vsel %vm1682, %v1680, %v1582
        %v1730 = vsel %vm1682, %v1681, %v1584
        %v1731 = vld [vmem:[%s2] sm:$0xff]
        %v1732 = vld [vmem:[%s2 + $0x8] sm:$0xff]
        %v1733 = vld [vmem:[%s2 + $0x10] sm:$0xff]
        %v1734 = vld [vmem:[%s2 + $0x18] sm:$0xff]
        %v1735 = vld [vmem:[%s2 + $0x20] sm:$0xff]
        %v1736 = vld [vmem:[%s2 + $0x28] sm:$0xff]
        %v1737 = vld [vmem:[%s2 + $0x30] sm:$0xff]
        %v1738 = vld [vmem:[%s2 + $0x38] sm:$0xff]
        %v1739 = vld [vmem:[%s2 + $0x40] sm:$0xff]
        %v1740 = vld [vmem:[%s2 + $0x48] sm:$0xff]
        %v1741 = vld [vmem:[%s2 + $0x50] sm:$0xff]
        %v1742 = vld [vmem:[%s2 + $0x58] sm:$0xff]
        %v1743 = vld [vmem:[%s3] sm:$0x1]
        %v1745 = vlaneseq
        %v1746 = vshrl.u32 %v1745, 7
        %v1747 = vsub.s32 0, %v1746
        %v1748 = vrot.slane %v1743, %v1747
        %vm1750 = vcmask 785408
        %v1752 = vsel %vm1750, %v1683, 0
        %v1755 = vsel %vm1750, %v1684, 0
        %v1758 = vsel %vm1750, %v1685, 0
        %v1761 = vsel %vm1750, %v1686, 0
        %v1764 = vsel %vm1750, %v1687, 0
        %v1767 = vsel %vm1750, %v1688, 0
        %v1770 = vsel %vm1750, %v1689, 0
        %v1773 = vsel %vm1750, %v1690, 0
        %v1776 = vsel %vm1750, %v1691, 0
        %v1779 = vsel %vm1750, %v1692, 0
        %v1782 = vsel %vm1750, %v1693, 0
        %v1785 = vsel %vm1750, %v1694, 0
        %v1788 = vsel %vm1750, %v1695, 0
        %v1791 = vsel %vm1750, %v1696, 0
        %v1794 = vsel %vm1750, %v1697, 0
        %v1797 = vsel %vm1750, %v1698, 0
        %v1800 = vsel %vm1750, %v1699, 0
        %v1803 = vsel %vm1750, %v1700, 0
        %v1806 = vsel %vm1750, %v1701, 0
        %v1809 = vsel %vm1750, %v1702, 0
        %v1812 = vsel %vm1750, %v1703, 0
        %v1815 = vsel %vm1750, %v1704, 0
        %v1818 = vsel %vm1750, %v1705, 0
        %v1821 = vsel %vm1750, %v1706, 0
        %v1824 = vsel %vm1750, %v1707, 0
        %v1827 = vsel %vm1750, %v1708, 0
        %v1830 = vsel %vm1750, %v1709, 0
        %v1833 = vsel %vm1750, %v1710, 0
        %v1836 = vsel %vm1750, %v1711, 0
        %v1839 = vsel %vm1750, %v1712, 0
        %v1842 = vsel %vm1750, %v1713, 0
        %v1845 = vsel %vm1750, %v1714, 0
        %v1848 = vsel %vm1750, %v1715, 0
        %v1851 = vsel %vm1750, %v1716, 0
        %v1854 = vsel %vm1750, %v1717, 0
        %v1857 = vsel %vm1750, %v1718, 0
        %v1860 = vsel %vm1750, %v1719, 0
        %v1863 = vsel %vm1750, %v1720, 0
        %v1866 = vsel %vm1750, %v1721, 0
        %v1869 = vsel %vm1750, %v1722, 0
        %v1872 = vsel %vm1750, %v1723, 0
        %v1875 = vsel %vm1750, %v1724, 0
        %v1878 = vsel %vm1750, %v1725, 0
        %v1881 = vsel %vm1750, %v1726, 0
        %v1884 = vsel %vm1750, %v1727, 0
        %v1887 = vsel %vm1750, %v1728, 0
        %v1890 = vsel %vm1750, %v1729, 0
        %v1893 = vsel %vm1750, %v1730, 0
        %1895 = vmatprep.subr.mxu0 0.0
        %1896 = vmatpush1.msra.mxu0 %v1731
        %1897 = vmatprep.subr.mxu0 0.0
        %1898 = vmatpush1.msra.mxu0 %v1732
        %1899 = vmatprep.subr.mxu0 0.0
        %1900 = vmatpush1.msra.mxu0 %v1733
        %1901 = vmatprep.subr.mxu0 0.0
        %1902 = vmatpush1.msra.mxu0 %v1734
        %1903 = vmatprep.subr.mxu0 0.0
        %1904 = vmatpush1.msra.mxu0 %v1735
        %1905 = vmatprep.subr.mxu0 0.0
        %1906 = vmatpush1.msra.mxu0 %v1736
        %1907 = vmatprep.subr.mxu0 0.0
        %1908 = vmatpush1.msra.mxu0 %v1737
        %1909 = vmatprep.subr.mxu0 0.0
        %1910 = vmatpush1.msra.mxu0 %v1738
        %1911 = vmatprep.subr.mxu0 0.0
        %1912 = vmatpush1.msra.mxu0 %v1739
        %1913 = vmatprep.subr.mxu0 0.0
        %1914 = vmatpush1.msra.mxu0 %v1740
        %1915 = vmatprep.subr.mxu0 0.0
        %1916 = vmatpush1.msra.mxu0 %v1741
        %1917 = vmatprep.subr.mxu0 0.0
        %1918 = vmatpush1.msra.mxu0 %v1742
        %1919 = vmatprep.subr.mxu0 0.0
        %1920 = vmatpush1.msra.mxu0 0.0
        %1921 = vmatprep.subr.mxu0 0.0
        %1922 = vmatpush1.msra.mxu0 0.0
        %1923 = vmatprep.subr.mxu0 0.0
        %1924 = vmatpush1.msra.mxu0 0.0
        %1925 = vmatprep.subr.mxu0 0.0
        %1926 = vmatpush1.msra.mxu0 0.0
        %1927 = vmatprep.subr.mxu0 0.0
        %1928 = vmatpush1.msra.mxu0 0.0
        %1929 = vmatprep.subr.mxu0 0.0
        %1930 = vmatpush1.msra.mxu0 0.0
        %1931 = vmatprep.subr.mxu0 0.0
        %1932 = vmatpush1.msra.mxu0 0.0
        %1933 = vmatprep.subr.mxu0 0.0
        %1934 = vmatpush1.msra.mxu0 0.0
        %1935 = vmatprep.subr.mxu0 0.0
        %1936 = vmatpush1.msra.mxu0 0.0
        %1937 = vmatprep.subr.mxu0 0.0
        %1938 = vmatpush1.msra.mxu0 0.0
        %1939 = vmatprep.subr.mxu0 0.0
        %1940 = vmatpush1.msra.mxu0 0.0
        %1941 = vmatprep.subr.mxu0 0.0
        %1942 = vmatpush1.msra.mxu0 0.0
        %1943 = vmatprep.subr.mxu0 0.0
        %1944 = vmatpush1.msra.mxu0 0.0
        %1945 = vmatprep.subr.mxu0 0.0
        %1946 = vmatpush1.msra.mxu0 0.0
        %1947 = vmatprep.subr.mxu0 0.0
        %1948 = vmatpush1.msra.mxu0 0.0
        %1949 = vmatprep.subr.mxu0 0.0
        %1950 = vmatpush1.msra.mxu0 0.0
        %1951 = vmatprep.subr.mxu0 0.0
        %1952 = vmatpush1.msra.mxu0 0.0
        %1953 = vmatprep.subr.mxu0 0.0
        %1954 = vmatpush1.msra.mxu0 0.0
        %1955 = vmatprep.subr.mxu0 0.0
        %1956 = vmatpush1.msra.mxu0 0.0
        %1957 = vmatprep.subr.mxu0 0.0
        %1958 = vmatpush1.msra.mxu0 0.0
        %1959 = vmatprep.mubr.f32.mxu0 0.0
        %1960 = vmatmul.mubr.f32.gmra.mrb[0].mxu0 %v1752
        %v1961 = vpop.f32.mrb[0].mxu0
        %v1962 = vadd.f32 %v1748, %v1961
        %v1963 = vpop.f32.mrb[0].mxu0
        %1964 = vmatprep.mubr.f32.mxu0 0.0
        %1965 = vmatmul.mubr.f32.gmra.mrb[0].mxu0 %v1755
        %v1966 = vpop.f32.mrb[0].mxu0
        %v1967 = vadd.f32 %v1748, %v1966
        %v1968 = vpop.f32.mrb[0].mxu0
        %1969 = vmatprep.mubr.f32.mxu0 0.0
        %1970 = vmatmul.mubr.f32.gmra.mrb[0].mxu0 %v1758
        %v1971 = vpop.f32.mrb[0].mxu0
        %v1972 = vadd.f32 %v1748, %v1971
        %v1973 = vpop.f32.mrb[0].mxu0
        %1974 = vmatprep.mubr.f32.mxu0 0.0
        %1975 = vmatmul.mubr.f32.gmra.mrb[0].mxu0 %v1761
        %v1976 = vpop.f32.mrb[0].mxu0
        %v1977 = vadd.f32 %v1748, %v1976
        %v1978 = vpop.f32.mrb[0].mxu0
        %1979 = vmatprep.mubr.f32.mxu0 0.0
        %1980 = vmatmul.mubr.f32.gmra.mrb[0].mxu0 %v1764
        %v1981 = vpop.f32.mrb[0].mxu0
        %v1982 = vadd.f32 %v1748, %v1981
        %v1983 = vpop.f32.mrb[0].mxu0
        %1984 = vmatprep.mubr.f32.mxu0 0.0
        %1985 = vmatmul.mubr.f32.gmra.mrb[0].mxu0 %v1767
        %v1986 = vpop.f32.mrb[0].mxu0
        %v1987 = vadd.f32 %v1748, %v1986
        %v1988 = vpop.f32.mrb[0].mxu0
        %1989 = vmatprep.mubr.f32.mxu0 0.0
        %1990 = vmatmul.mubr.f32.gmra.mrb[0].mxu0 %v1770
        %v1991 = vpop.f32.mrb[0].mxu0
        %v1992 = vadd.f32 %v1748, %v1991
        %v1993 = vpop.f32.mrb[0].mxu0
        %1994 = vmatprep.mubr.f32.mxu0 0.0
        %1995 = vmatmul.mubr.f32.gmra.mrb[0].mxu0 %v1773
        %v1996 = vpop.f32.mrb[0].mxu0
        %v1997 = vadd.f32 %v1748, %v1996
        %v1998 = vpop.f32.mrb[0].mxu0
        %1999 = vmatprep.mubr.f32.mxu0 0.0
        %2000 = vmatmul.mubr.f32.gmra.mrb[0].mxu0 %v1776
        %v2001 = vpop.f32.mrb[0].mxu0
        %v2002 = vadd.f32 %v1748, %v2001
        %v2003 = vpop.f32.mrb[0].mxu0
        %2004 = vmatprep.mubr.f32.mxu0 0.0
        %2005 = vmatmul.mubr.f32.gmra.mrb[0].mxu0 %v1779
        %v2006 = vpop.f32.mrb[0].mxu0
        %v2007 = vadd.f32 %v1748, %v2006
        %v2008 = vpop.f32.mrb[0].mxu0
        %2009 = vmatprep.mubr.f32.mxu0 0.0
        %2010 = vmatmul.mubr.f32.gmra.mrb[0].mxu0 %v1782
        %v2011 = vpop.f32.mrb[0].mxu0
        %v2012 = vadd.f32 %v1748, %v2011
        %v2013 = vpop.f32.mrb[0].mxu0
        %2014 = vmatprep.mubr.f32.mxu0 0.0
        %2015 = vmatmul.mubr.f32.gmra.mrb[0].mxu0 %v1785
        %v2016 = vpop.f32.mrb[0].mxu0
        %v2017 = vadd.f32 %v1748, %v2016
        %v2018 = vpop.f32.mrb[0].mxu0
        %2019 = vmatprep.mubr.f32.mxu0 0.0
        %2020 = vmatmul.mubr.f32.gmra.mrb[0].mxu0 %v1788
        %v2021 = vpop.f32.mrb[0].mxu0
        %v2022 = vadd.f32 %v1748, %v2021
        %v2023 = vpop.f32.mrb[0].mxu0
        %2024 = vmatprep.mubr.f32.mxu0 0.0
        %2025 = vmatmul.mubr.f32.gmra.mrb[0].mxu0 %v1791
        %v2026 = vpop.f32.mrb[0].mxu0
        %v2027 = vadd.f32 %v1748, %v2026
        %v2028 = vpop.f32.mrb[0].mxu0
        %2029 = vmatprep.mubr.f32.mxu0 0.0
        %2030 = vmatmul.mubr.f32.gmra.mrb[0].mxu0 %v1794
        %v2031 = vpop.f32.mrb[0].mxu0
        %v2032 = vadd.f32 %v1748, %v2031
        %v2033 = vpop.f32.mrb[0].mxu0
        %2034 = vmatprep.mubr.f32.mxu0 0.0
        %2035 = vmatmul.mubr.f32.gmra.mrb[0].mxu0 %v1797
        %v2036 = vpop.f32.mrb[0].mxu0
        %v2037 = vadd.f32 %v1748, %v2036
        %v2038 = vpop.f32.mrb[0].mxu0
        %2039 = vmatprep.mubr.f32.mxu0 0.0
        %2040 = vmatmul.mubr.f32.gmra.mrb[0].mxu0 %v1800
        %v2041 = vpop.f32.mrb[0].mxu0
        %v2042 = vadd.f32 %v1748, %v2041
        %v2043 = vpop.f32.mrb[0].mxu0
        %2044 = vmatprep.mubr.f32.mxu0 0.0
        %2045 = vmatmul.mubr.f32.gmra.mrb[0].mxu0 %v1803
        %v2046 = vpop.f32.mrb[0].mxu0
        %v2047 = vadd.f32 %v1748, %v2046
        %v2048 = vpop.f32.mrb[0].mxu0
        %2049 = vmatprep.mubr.f32.mxu0 0.0
        %2050 = vmatmul.mubr.f32.gmra.mrb[0].mxu0 %v1806
        %v2051 = vpop.f32.mrb[0].mxu0
        %v2052 = vadd.f32 %v1748, %v2051
        %v2053 = vpop.f32.mrb[0].mxu0
        %2054 = vmatprep.mubr.f32.mxu0 0.0
        %2055 = vmatmul.mubr.f32.gmra.mrb[0].mxu0 %v1809
        %v2056 = vpop.f32.mrb[0].mxu0
        %v2057 = vadd.f32 %v1748, %v2056
        %v2058 = vpop.f32.mrb[0].mxu0
        %2059 = vmatprep.mubr.f32.mxu0 0.0
        %2060 = vmatmul.mubr.f32.gmra.mrb[0].mxu0 %v1812
        %v2061 = vpop.f32.mrb[0].mxu0
        %v2062 = vadd.f32 %v1748, %v2061
        %v2063 = vpop.f32.mrb[0].mxu0
        %2064 = vmatprep.mubr.f32.mxu0 0.0
        %2065 = vmatmul.mubr.f32.gmra.mrb[0].mxu0 %v1815
        %v2066 = vpop.f32.mrb[0].mxu0
        %v2067 = vadd.f32 %v1748, %v2066
        %v2068 = vpop.f32.mrb[0].mxu0
        %2069 = vmatprep.mubr.f32.mxu0 0.0
        %2070 = vmatmul.mubr.f32.gmra.mrb[0].mxu0 %v1818
        %v2071 = vpop.f32.mrb[0].mxu0
        %v2072 = vadd.f32 %v1748, %v2071
        %v2073 = vpop.f32.mrb[0].mxu0
        %2074 = vmatprep.mubr.f32.mxu0 0.0
        %2075 = vmatmul.mubr.f32.gmra.mrb[0].mxu0 %v1821
        %v2076 = vpop.f32.mrb[0].mxu0
        %v2077 = vadd.f32 %v1748, %v2076
        %v2078 = vpop.f32.mrb[0].mxu0
        %2079 = vmatprep.mubr.f32.mxu0 0.0
        %2080 = vmatmul.mubr.f32.gmra.mrb[0].mxu0 %v1824
        %v2081 = vpop.f32.mrb[0].mxu0
        %v2082 = vadd.f32 %v1748, %v2081
        %v2083 = vpop.f32.mrb[0].mxu0
        %2084 = vmatprep.mubr.f32.mxu0 0.0
        %2085 = vmatmul.mubr.f32.gmra.mrb[0].mxu0 %v1827
        %v2086 = vpop.f32.mrb[0].mxu0
        %v2087 = vadd.f32 %v1748, %v2086
        %v2088 = vpop.f32.mrb[0].mxu0
        %2089 = vmatprep.mubr.f32.mxu0 0.0
        %2090 = vmatmul.mubr.f32.gmra.mrb[0].mxu0 %v1830
        %v2091 = vpop.f32.mrb[0].mxu0
        %v2092 = vadd.f32 %v1748, %v2091
        %v2093 = vpop.f32.mrb[0].mxu0
        %2094 = vmatprep.mubr.f32.mxu0 0.0
        %2095 = vmatmul.mubr.f32.gmra.mrb[0].mxu0 %v1833
        %v2096 = vpop.f32.mrb[0].mxu0
        %v2097 = vadd.f32 %v1748, %v2096
        %v2098 = vpop.f32.mrb[0].mxu0
        %2099 = vmatprep.mubr.f32.mxu0 0.0
        %2100 = vmatmul.mubr.f32.gmra.mrb[0].mxu0 %v1836
        %v2101 = vpop.f32.mrb[0].mxu0
        %v2102 = vadd.f32 %v1748, %v2101
        %v2103 = vpop.f32.mrb[0].mxu0
        %2104 = vmatprep.mubr.f32.mxu0 0.0
        %2105 = vmatmul.mubr.f32.gmra.mrb[0].mxu0 %v1839
        %v2106 = vpop.f32.mrb[0].mxu0
        %v2107 = vadd.f32 %v1748, %v2106
        %v2108 = vpop.f32.mrb[0].mxu0
        %2109 = vmatprep.mubr.f32.mxu0 0.0
        %2110 = vmatmul.mubr.f32.gmra.mrb[0].mxu0 %v1842
        %v2111 = vpop.f32.mrb[0].mxu0
        %v2112 = vadd.f32 %v1748, %v2111
        %v2113 = vpop.f32.mrb[0].mxu0
        %2114 = vmatprep.mubr.f32.mxu0 0.0
        %2115 = vmatmul.mubr.f32.gmra.mrb[0].mxu0 %v1845
        %v2116 = vpop.f32.mrb[0].mxu0
        %v2117 = vadd.f32 %v1748, %v2116
        %v2118 = vpop.f32.mrb[0].mxu0
        %2119 = vmatprep.mubr.f32.mxu0 0.0
        %2120 = vmatmul.mubr.f32.gmra.mrb[0].mxu0 %v1848
        %v2121 = vpop.f32.mrb[0].mxu0
        %v2122 = vadd.f32 %v1748, %v2121
        %v2123 = vpop.f32.mrb[0].mxu0
        %2124 = vmatprep.mubr.f32.mxu0 0.0
        %2125 = vmatmul.mubr.f32.gmra.mrb[0].mxu0 %v1851
        %v2126 = vpop.f32.mrb[0].mxu0
        %v2127 = vadd.f32 %v1748, %v2126
        %v2128 = vpop.f32.mrb[0].mxu0
        %2129 = vmatprep.mubr.f32.mxu0 0.0
        %2130 = vmatmul.mubr.f32.gmra.mrb[0].mxu0 %v1854
        %v2131 = vpop.f32.mrb[0].mxu0
        %v2132 = vadd.f32 %v1748, %v2131
        %v2133 = vpop.f32.mrb[0].mxu0
        %2134 = vmatprep.mubr.f32.mxu0 0.0
        %2135 = vmatmul.mubr.f32.gmra.mrb[0].mxu0 %v1857
        %v2136 = vpop.f32.mrb[0].mxu0
        %v2137 = vadd.f32 %v1748, %v2136
        %v2138 = vpop.f32.mrb[0].mxu0
        %2139 = vmatprep.mubr.f32.mxu0 0.0
        %2140 = vmatmul.mubr.f32.gmra.mrb[0].mxu0 %v1860
        %v2141 = vpop.f32.mrb[0].mxu0
        %v2142 = vadd.f32 %v1748, %v2141
        %v2143 = vpop.f32.mrb[0].mxu0
        %2144 = vmatprep.mubr.f32.mxu0 0.0
        %2145 = vmatmul.mubr.f32.gmra.mrb[0].mxu0 %v1863
        %v2146 = vpop.f32.mrb[0].mxu0
        %v2147 = vadd.f32 %v1748, %v2146
        %v2148 = vpop.f32.mrb[0].mxu0
        %2149 = vmatprep.mubr.f32.mxu0 0.0
        %2150 = vmatmul.mubr.f32.gmra.mrb[0].mxu0 %v1866
        %v2151 = vpop.f32.mrb[0].mxu0
        %v2152 = vadd.f32 %v1748, %v2151
        %v2153 = vpop.f32.mrb[0].mxu0
        %2154 = vmatprep.mubr.f32.mxu0 0.0
        %2155 = vmatmul.mubr.f32.gmra.mrb[0].mxu0 %v1869
        %v2156 = vpop.f32.mrb[0].mxu0
        %v2157 = vadd.f32 %v1748, %v2156
        %v2158 = vpop.f32.mrb[0].mxu0
        %2159 = vmatprep.mubr.f32.mxu0 0.0
        %2160 = vmatmul.mubr.f32.gmra.mrb[0].mxu0 %v1872
        %v2161 = vpop.f32.mrb[0].mxu0
        %v2162 = vadd.f32 %v1748, %v2161
        %v2163 = vpop.f32.mrb[0].mxu0
        %2164 = vmatprep.mubr.f32.mxu0 0.0
        %2165 = vmatmul.mubr.f32.gmra.mrb[0].mxu0 %v1875
        %v2166 = vpop.f32.mrb[0].mxu0
        %v2167 = vadd.f32 %v1748, %v2166
        %v2168 = vpop.f32.mrb[0].mxu0
        %2169 = vmatprep.mubr.f32.mxu0 0.0
        %2170 = vmatmul.mubr.f32.gmra.mrb[0].mxu0 %v1878
        %v2171 = vpop.f32.mrb[0].mxu0
        %v2172 = vadd.f32 %v1748, %v2171
        %v2173 = vpop.f32.mrb[0].mxu0
        %2174 = vmatprep.mubr.f32.mxu0 0.0
        %2175 = vmatmul.mubr.f32.gmra.mrb[0].mxu0 %v1881
        %v2176 = vpop.f32.mrb[0].mxu0
        %v2177 = vadd.f32 %v1748, %v2176
        %v2178 = vpop.f32.mrb[0].mxu0
        %2179 = vmatprep.mubr.f32.mxu0 0.0
        %2180 = vmatmul.mubr.f32.gmra.mrb[0].mxu0 %v1884
        %v2181 = vpop.f32.mrb[0].mxu0
        %v2182 = vadd.f32 %v1748, %v2181
        %v2183 = vpop.f32.mrb[0].mxu0
        %2184 = vmatprep.mubr.f32.mxu0 0.0
        %2185 = vmatmul.mubr.f32.gmra.mrb[0].mxu0 %v1887
        %v2186 = vpop.f32.mrb[0].mxu0
        %v2187 = vadd.f32 %v1748, %v2186
        %v2188 = vpop.f32.mrb[0].mxu0
        %2189 = vmatprep.mubr.f32.mxu0 0.0
        %2190 = vmatmul.mubr.f32.gmra.mrb[0].mxu0 %v1890
        %v2191 = vpop.f32.mrb[0].mxu0
        %v2192 = vadd.f32 %v1748, %v2191
        %v2193 = vpop.f32.mrb[0].mxu0
        %2194 = vmatprep.mubr.f32.mxu0 0.0
        %2195 = vmatmul.mubr.f32.gmra.mrb[0].mxu0 %v1893
        %v2196 = vpop.f32.mrb[0].mxu0
        %v2197 = vpop.f32.mrb[0].mxu0
        %2198 = vdwg.mxu0
        %v2199 = vmax.f32 %v1962, 0.0
        %v2200 = vmax.f32 %v1967, 0.0
        %v2201 = vmax.f32 %v1972, 0.0
        %v2202 = vmax.f32 %v1977, 0.0
        %v2203 = vmax.f32 %v1982, 0.0
        %v2204 = vmax.f32 %v1987, 0.0
        %v2205 = vmax.f32 %v1992, 0.0
        %v2206 = vmax.f32 %v1997, 0.0
        %v2207 = vmax.f32 %v2002, 0.0
        %v2208 = vmax.f32 %v2007, 0.0
        %v2209 = vmax.f32 %v2012, 0.0
        %v2210 = vmax.f32 %v2017, 0.0
        %v2211 = vmax.f32 %v2022, 0.0
        %v2212 = vmax.f32 %v2027, 0.0
        %v2213 = vmax.f32 %v2032, 0.0
        %v2214 = vmax.f32 %v2037, 0.0
        %v2215 = vmax.f32 %v2042, 0.0
        %v2216 = vmax.f32 %v2047, 0.0
        %v2217 = vmax.f32 %v2052, 0.0
        %v2218 = vmax.f32 %v2057, 0.0
        %v2219 = vmax.f32 %v2062, 0.0
        %v2220 = vmax.f32 %v2067, 0.0
        %v2221 = vmax.f32 %v2072, 0.0
        %v2222 = vmax.f32 %v2077, 0.0
        %v2223 = vmax.f32 %v2082, 0.0
        %v2224 = vmax.f32 %v2087, 0.0
        %v2225 = vmax.f32 %v2092, 0.0
        %v2226 = vmax.f32 %v2097, 0.0
        %v2227 = vmax.f32 %v2102, 0.0
        %v2228 = vmax.f32 %v2107, 0.0
        %v2229 = vmax.f32 %v2112, 0.0
        %v2230 = vmax.f32 %v2117, 0.0
        %v2231 = vmax.f32 %v2122, 0.0
        %v2232 = vmax.f32 %v2127, 0.0
        %v2233 = vmax.f32 %v2132, 0.0
        %v2234 = vmax.f32 %v2137, 0.0
        %v2235 = vmax.f32 %v2142, 0.0
        %v2236 = vmax.f32 %v2147, 0.0
        %v2237 = vmax.f32 %v2152, 0.0
        %v2238 = vmax.f32 %v2157, 0.0
        %v2239 = vmax.f32 %v2162, 0.0
        %v2240 = vmax.f32 %v2167, 0.0
        %v2241 = vmax.f32 %v2172, 0.0
        %v2242 = vmax.f32 %v2177, 0.0
        %v2243 = vmax.f32 %v2182, 0.0
        %v2244 = vmax.f32 %v2187, 0.0
        %v2245 = vmax.f32 %v2192, 0.0
        %v2246 = vmax.f32 %v2201, %v2202
        %v2247 = vmax.f32 %v2204, %v2205
        %v2248 = vmax.f32 %v2207, %v2208
        %v2249 = vmax.f32 %v2210, %v2211
        %v2250 = vmax.f32 %v2213, %v2214
        %v2251 = vmax.f32 %v2216, %v2217
        %v2252 = vmax.f32 %v2219, %v2220
        %v2253 = vmax.f32 %v2222, %v2223
        %v2254 = vmax.f32 %v2225, %v2226
        %v2255 = vmax.f32 %v2228, %v2229
        %v2256 = vmax.f32 %v2231, %v2232
        %v2257 = vmax.f32 %v2234, %v2235
        %v2258 = vmax.f32 %v2237, %v2238
        %v2259 = vmax.f32 %v2240, %v2241
        %v2260 = vmax.f32 %v2243, %v2244
        %v2261 = vmax.f32 %v2199, %v2200
        %v2262 = vmax.f32 %v2246, %v2203
        %v2263 = vmax.f32 %v2247, %v2206
        %v2264 = vmax.f32 %v2248, %v2209
        %v2265 = vmax.f32 %v2249, %v2212
        %v2266 = vmax.f32 %v2250, %v2215
        %v2267 = vmax.f32 %v2251, %v2218
        %v2268 = vmax.f32 %v2252, %v2221
        %v2269 = vmax.f32 %v2253, %v2224
        %v2270 = vmax.f32 %v2254, %v2227
        %v2271 = vmax.f32 %v2255, %v2230
        %v2272 = vmax.f32 %v2256, %v2233
        %v2273 = vmax.f32 %v2257, %v2236
        %v2274 = vmax.f32 %v2258, %v2239
        %v2275 = vmax.f32 %v2259, %v2242
        %v2276 = vmax.f32 %v2260, %v2245
        %2293 = vrot.lane.b32.xlu0 %v2261, 16
        %v2294 = vpop.permute.xlu0 %2293
        %2295 = vrot.lane.b32.xlu0 %v2262, 16
        %v2296 = vpop.permute.xlu0 %2295
        %2297 = vrot.lane.b32.xlu0 %v2263, 16
        %v2298 = vpop.permute.xlu0 %2297
        %2299 = vrot.lane.b32.xlu0 %v2264, 16
        %v2300 = vpop.permute.xlu0 %2299
        %2301 = vrot.lane.b32.xlu0 %v2265, 16
        %v2302 = vpop.permute.xlu0 %2301
        %2303 = vrot.lane.b32.xlu0 %v2266, 16
        %v2304 = vpop.permute.xlu0 %2303
        %2305 = vrot.lane.b32.xlu0 %v2267, 16
        %v2306 = vpop.permute.xlu0 %2305
        %2307 = vrot.lane.b32.xlu0 %v2268, 16
        %v2308 = vpop.permute.xlu0 %2307
        %2309 = vrot.lane.b32.xlu0 %v2269, 16
        %v2310 = vpop.permute.xlu0 %2309
        %2311 = vrot.lane.b32.xlu0 %v2270, 16
        %v2312 = vpop.permute.xlu0 %2311
        %2313 = vrot.lane.b32.xlu0 %v2271, 16
        %v2314 = vpop.permute.xlu0 %2313
        %2315 = vrot.lane.b32.xlu0 %v2272, 16
        %v2316 = vpop.permute.xlu0 %2315
        %2317 = vrot.lane.b32.xlu0 %v2273, 16
        %v2318 = vpop.permute.xlu0 %2317
        %2319 = vrot.lane.b32.xlu0 %v2274, 16
        %v2320 = vpop.permute.xlu0 %2319
        %2321 = vrot.lane.b32.xlu0 %v2275, 16
        %v2322 = vpop.permute.xlu0 %2321
        %2323 = vrot.lane.b32.xlu0 %v2276, 16
        %v2324 = vpop.permute.xlu0 %2323
        %2342 = vrot.lane.b32.xlu0 %v2262, 32
        %v2343 = vpop.permute.xlu0 %2342
        %2344 = vrot.lane.b32.xlu0 %v2263, 32
        %v2345 = vpop.permute.xlu0 %2344
        %2346 = vrot.lane.b32.xlu0 %v2264, 32
        %v2347 = vpop.permute.xlu0 %2346
        %2348 = vrot.lane.b32.xlu0 %v2265, 32
        %v2349 = vpop.permute.xlu0 %2348
        %2350 = vrot.lane.b32.xlu0 %v2266, 32
        %v2351 = vpop.permute.xlu0 %2350
        %2352 = vrot.lane.b32.xlu0 %v2267, 32
        %v2353 = vpop.permute.xlu0 %2352
        %2354 = vrot.lane.b32.xlu0 %v2268, 32
        %v2355 = vpop.permute.xlu0 %2354
        %2356 = vrot.lane.b32.xlu0 %v2269, 32
        %v2357 = vpop.permute.xlu0 %2356
        %2358 = vrot.lane.b32.xlu0 %v2270, 32
        %v2359 = vpop.permute.xlu0 %2358
        %2360 = vrot.lane.b32.xlu0 %v2271, 32
        %v2361 = vpop.permute.xlu0 %2360
        %2362 = vrot.lane.b32.xlu0 %v2272, 32
        %v2363 = vpop.permute.xlu0 %2362
        %2364 = vrot.lane.b32.xlu0 %v2273, 32
        %v2365 = vpop.permute.xlu0 %2364
        %2366 = vrot.lane.b32.xlu0 %v2274, 32
        %v2367 = vpop.permute.xlu0 %2366
        %2368 = vrot.lane.b32.xlu0 %v2275, 32
        %v2369 = vpop.permute.xlu0 %2368
        %2370 = vrot.lane.b32.xlu0 %v2276, 32
        %v2371 = vpop.permute.xlu0 %2370
        %2372 = vrot.lane.b32.xlu0 0.0, 32
        %v2373 = vpop.permute.xlu0 %2372
        %vm2390 = vcmask 130048
        %v2391 = vsel %vm2390, 0.0, %v2294
        %v2392 = vsel %vm2390, %v2261, %v2296
        %v2393 = vsel %vm2390, %v2262, %v2298
        %v2394 = vsel %vm2390, %v2263, %v2300
        %v2395 = vsel %vm2390, %v2264, %v2302
        %v2396 = vsel %vm2390, %v2265, %v2304
        %v2397 = vsel %vm2390, %v2266, %v2306
        %v2398 = vsel %vm2390, %v2267, %v2308
        %v2399 = vsel %vm2390, %v2268, %v2310
        %v2400 = vsel %vm2390, %v2269, %v2312
        %v2401 = vsel %vm2390, %v2270, %v2314
        %v2402 = vsel %vm2390, %v2271, %v2316
        %v2403 = vsel %vm2390, %v2272, %v2318
        %v2404 = vsel %vm2390, %v2273, %v2320
        %v2405 = vsel %vm2390, %v2274, %v2322
        %v2406 = vsel %vm2390, %v2275, %v2324
        %v2407 = vsel %vm1633, %v2391, %v2343
        %v2408 = vsel %vm1633, %v2392, %v2345
        %v2409 = vsel %vm1633, %v2393, %v2347
        %v2410 = vsel %vm1633, %v2394, %v2349
        %v2411 = vsel %vm1633, %v2395, %v2351
        %v2412 = vsel %vm1633, %v2396, %v2353
        %v2413 = vsel %vm1633, %v2397, %v2355
        %v2414 = vsel %vm1633, %v2398, %v2357
        %v2415 = vsel %vm1633, %v2399, %v2359
        %v2416 = vsel %vm1633, %v2400, %v2361
        %v2417 = vsel %vm1633, %v2401, %v2363
        %v2418 = vsel %vm1633, %v2402, %v2365
        %v2419 = vsel %vm1633, %v2403, %v2367
        %v2420 = vsel %vm1633, %v2404, %v2369
        %v2421 = vsel %vm1633, %v2405, %v2371
        %v2422 = vsel %vm1633, %v2406, %v2373
        %v2423 = vld [vmem:[%s4] sm:$0xff]
        %v2424 = vld [vmem:[%s4 + $0x8] sm:$0xff]
        %v2425 = vld [vmem:[%s4 + $0x10] sm:$0xff]
        %v2426 = vld [vmem:[%s4 + $0x18] sm:$0xff]
        %v2427 = vld [vmem:[%s4 + $0x20] sm:$0xff]
        %v2428 = vld [vmem:[%s4 + $0x28] sm:$0xff]
        %v2429 = vld [vmem:[%s5] sm:$0x1]
        %v2431 = vlaneseq
        %v2432 = vshrl.u32 %v2431, 7
        %v2433 = vsub.s32 0, %v2432
        %v2434 = vrot.slane %v2429, %v2433
        %vm2436 = vcmask 392192
        %v2438 = vsel %vm2436, %v2407, 0
        %v2441 = vsel %vm2436, %v2408, 0
        %v2444 = vsel %vm2436, %v2409, 0
        %v2447 = vsel %vm2436, %v2410, 0
        %v2450 = vsel %vm2436, %v2411, 0
        %v2453 = vsel %vm2436, %v2412, 0
        %v2456 = vsel %vm2436, %v2413, 0
        %v2459 = vsel %vm2436, %v2414, 0
        %v2462 = vsel %vm2436, %v2415, 0
        %v2465 = vsel %vm2436, %v2416, 0
        %v2468 = vsel %vm2436, %v2417, 0
        %v2471 = vsel %vm2436, %v2418, 0
        %v2474 = vsel %vm2436, %v2419, 0
        %v2477 = vsel %vm2436, %v2420, 0
        %v2480 = vsel %vm2436, %v2421, 0
        %v2483 = vsel %vm2436, %v2422, 0
        %2485 = vmatprep.subr.mxu0 0.0
        %2486 = vmatpush1.msra.mxu0 %v2423
        %2487 = vmatprep.subr.mxu0 0.0
        %2488 = vmatpush1.msra.mxu0 %v2424
        %2489 = vmatprep.subr.mxu0 0.0
        %2490 = vmatpush1.msra.mxu0 %v2425
        %2491 = vmatprep.subr.mxu0 0.0
        %2492 = vmatpush1.msra.mxu0 %v2426
        %2493 = vmatprep.subr.mxu0 0.0
        %2494 = vmatpush1.msra.mxu0 %v2427
        %2495 = vmatprep.subr.mxu0 0.0
        %2496 = vmatpush1.msra.mxu0 %v2428
        %2497 = vmatprep.subr.mxu0 0.0
        %2498 = vmatpush1.msra.mxu0 0.0
        %2499 = vmatprep.subr.mxu0 0.0
        %2500 = vmatpush1.msra.mxu0 0.0
        %2501 = vmatprep.subr.mxu0 0.0
        %2502 = vmatpush1.msra.mxu0 0.0
        %2503 = vmatprep.subr.mxu0 0.0
        %2504 = vmatpush1.msra.mxu0 0.0
        %2505 = vmatprep.subr.mxu0 0.0
        %2506 = vmatpush1.msra.mxu0 0.0
        %2507 = vmatprep.subr.mxu0 0.0
        %2508 = vmatpush1.msra.mxu0 0.0
        %2509 = vmatprep.subr.mxu0 0.0
        %2510 = vmatpush1.msra.mxu0 0.0
        %2511 = vmatprep.subr.mxu0 0.0
        %2512 = vmatpush1.msra.mxu0 0.0
        %2513 = vmatprep.subr.mxu0 0.0
        %2514 = vmatpush1.msra.mxu0 0.0
        %2515 = vmatprep.subr.mxu0 0.0
        %2516 = vmatpush1.msra.mxu0 0.0
        %2517 = vmatprep.subr.mxu0 0.0
        %2518 = vmatpush1.msra.mxu0 0.0
        %2519 = vmatprep.subr.mxu0 0.0
        %2520 = vmatpush1.msra.mxu0 0.0
        %2521 = vmatprep.subr.mxu0 0.0
        %2522 = vmatpush1.msra.mxu0 0.0
        %2523 = vmatprep.subr.mxu0 0.0
        %2524 = vmatpush1.msra.mxu0 0.0
        %2525 = vmatprep.subr.mxu0 0.0
        %2526 = vmatpush1.msra.mxu0 0.0
        %2527 = vmatprep.subr.mxu0 0.0
        %2528 = vmatpush1.msra.mxu0 0.0
        %2529 = vmatprep.subr.mxu0 0.0
        %2530 = vmatpush1.msra.mxu0 0.0
        %2531 = vmatprep.subr.mxu0 0.0
        %2532 = vmatpush1.msra.mxu0 0.0
        %2533 = vmatprep.subr.mxu0 0.0
        %2534 = vmatpush1.msra.mxu0 0.0
        %2535 = vmatprep.subr.mxu0 0.0
        %2536 = vmatpush1.msra.mxu0 0.0
        %2537 = vmatprep.subr.mxu0 0.0
        %2538 = vmatpush1.msra.mxu0 0.0
        %2539 = vmatprep.subr.mxu0 0.0
        %2540 = vmatpush1.msra.mxu0 0.0
        %2541 = vmatprep.subr.mxu0 0.0
        %2542 = vmatpush1.msra.mxu0 0.0
        %2543 = vmatprep.subr.mxu0 0.0
        %2544 = vmatpush1.msra.mxu0 0.0
        %2545 = vmatprep.subr.mxu0 0.0
        %2546 = vmatpush1.msra.mxu0 0.0
        %2547 = vmatprep.subr.mxu0 0.0
        %2548 = vmatpush1.msra.mxu0 0.0
        %2549 = vmatprep.mubr.f32.mxu0 0.0
        %2550 = vmatmul.mubr.f32.gmra.mrb[0].mxu0 %v2438
        %v2551 = vpop.f32.mrb[0].mxu0
        %v2552 = vadd.f32 %v2434, %v2551
        %v2553 = vpop.f32.mrb[0].mxu0
        %2554 = vmatprep.mubr.f32.mxu0 0.0
        %2555 = vmatmul.mubr.f32.gmra.mrb[0].mxu0 %v2441
        %v2556 = vpop.f32.mrb[0].mxu0
        %v2557 = vadd.f32 %v2434, %v2556
        %v2558 = vpop.f32.mrb[0].mxu0
        %2559 = vmatprep.mubr.f32.mxu0 0.0
        %2560 = vmatmul.mubr.f32.gmra.mrb[0].mxu0 %v2444
        %v2561 = vpop.f32.mrb[0].mxu0
        %v2562 = vadd.f32 %v2434, %v2561
        %v2563 = vpop.f32.mrb[0].mxu0
        %2564 = vmatprep.mubr.f32.mxu0 0.0
        %2565 = vmatmul.mubr.f32.gmra.mrb[0].mxu0 %v2447
        %v2566 = vpop.f32.mrb[0].mxu0
        %v2567 = vadd.f32 %v2434, %v2566
        %v2568 = vpop.f32.mrb[0].mxu0
        %2569 = vmatprep.mubr.f32.mxu0 0.0
        %2570 = vmatmul.mubr.f32.gmra.mrb[0].mxu0 %v2450
        %v2571 = vpop.f32.mrb[0].mxu0
        %v2572 = vadd.f32 %v2434, %v2571
        %v2573 = vpop.f32.mrb[0].mxu0
        %2574 = vmatprep.mubr.f32.mxu0 0.0
        %2575 = vmatmul.mubr.f32.gmra.mrb[0].mxu0 %v2453
        %v2576 = vpop.f32.mrb[0].mxu0
        %v2577 = vadd.f32 %v2434, %v2576
        %v2578 = vpop.f32.mrb[0].mxu0
        %2579 = vmatprep.mubr.f32.mxu0 0.0
        %2580 = vmatmul.mubr.f32.gmra.mrb[0].mxu0 %v2456
        %v2581 = vpop.f32.mrb[0].mxu0
        %v2582 = vadd.f32 %v2434, %v2581
        %v2583 = vpop.f32.mrb[0].mxu0
        %2584 = vmatprep.mubr.f32.mxu0 0.0
        %2585 = vmatmul.mubr.f32.gmra.mrb[0].mxu0 %v2459
        %v2586 = vpop.f32.mrb[0].mxu0
        %v2587 = vadd.f32 %v2434, %v2586
        %v2588 = vpop.f32.mrb[0].mxu0
        %2589 = vmatprep.mubr.f32.mxu0 0.0
        %2590 = vmatmul.mubr.f32.gmra.mrb[0].mxu0 %v2462
        %v2591 = vpop.f32.mrb[0].mxu0
        %v2592 = vadd.f32 %v2434, %v2591
        %v2593 = vpop.f32.mrb[0].mxu0
        %2594 = vmatprep.mubr.f32.mxu0 0.0
        %2595 = vmatmul.mubr.f32.gmra.mrb[0].mxu0 %v2465
        %v2596 = vpop.f32.mrb[0].mxu0
        %v2597 = vadd.f32 %v2434, %v2596
        %v2598 = vpop.f32.mrb[0].mxu0
        %2599 = vmatprep.mubr.f32.mxu0 0.0
        %2600 = vmatmul.mubr.f32.gmra.mrb[0].mxu0 %v2468
        %v2601 = vpop.f32.mrb[0].mxu0
        %v2602 = vadd.f32 %v2434, %v2601
        %v2603 = vpop.f32.mrb[0].mxu0
        %2604 = vmatprep.mubr.f32.mxu0 0.0
        %2605 = vmatmul.mubr.f32.gmra.mrb[0].mxu0 %v2471
        %v2606 = vpop.f32.mrb[0].mxu0
        %v2607 = vadd.f32 %v2434, %v2606
        %v2608 = vpop.f32.mrb[0].mxu0
        %2609 = vmatprep.mubr.f32.mxu0 0.0
        %2610 = vmatmul.mubr.f32.gmra.mrb[0].mxu0 %v2474
        %v2611 = vpop.f32.mrb[0].mxu0
        %v2612 = vadd.f32 %v2434, %v2611
        %v2613 = vpop.f32.mrb[0].mxu0
        %2614 = vmatprep.mubr.f32.mxu0 0.0
        %2615 = vmatmul.mubr.f32.gmra.mrb[0].mxu0 %v2477
        %v2616 = vpop.f32.mrb[0].mxu0
        %v2617 = vadd.f32 %v2434, %v2616
        %v2618 = vpop.f32.mrb[0].mxu0
        %2619 = vmatprep.mubr.f32.mxu0 0.0
        %2620 = vmatmul.mubr.f32.gmra.mrb[0].mxu0 %v2480
        %v2621 = vpop.f32.mrb[0].mxu0
        %v2622 = vadd.f32 %v2434, %v2621
        %v2623 = vpop.f32.mrb[0].mxu0
        %2624 = vmatprep.mubr.f32.mxu0 0.0
        %2625 = vmatmul.mubr.f32.gmra.mrb[0].mxu0 %v2483
        %v2626 = vpop.f32.mrb[0].mxu0
        %v2627 = vadd.f32 %v2434, %v2626
        %v2628 = vpop.f32.mrb[0].mxu0
        %2629 = vdwg.mxu0
        %v2630 = vmax.f32 %v2552, 0.0
        %v2631 = vmax.f32 %v2557, 0.0
        %v2632 = vmax.f32 %v2562, 0.0
        %v2633 = vmax.f32 %v2567, 0.0
        %v2634 = vmax.f32 %v2572, 0.0
        %v2635 = vmax.f32 %v2577, 0.0
        %v2636 = vmax.f32 %v2582, 0.0
        %v2637 = vmax.f32 %v2587, 0.0
        %v2638 = vmax.f32 %v2592, 0.0
        %v2639 = vmax.f32 %v2597, 0.0
        %v2640 = vmax.f32 %v2602, 0.0
        %v2641 = vmax.f32 %v2607, 0.0
        %v2642 = vmax.f32 %v2612, 0.0
        %v2643 = vmax.f32 %v2617, 0.0
        %v2644 = vmax.f32 %v2622, 0.0
        %v2645 = vmax.f32 %v2627, 0.0
        %v2646 = vmax.f32 %v2632, %v2633
        %v2647 = vmax.f32 %v2635, %v2636
        %v2648 = vmax.f32 %v2638, %v2639
        %v2649 = vmax.f32 %v2641, %v2642
        %v2650 = vmax.f32 %v2644, %v2645
        %v2651 = vmax.f32 %v2630, %v2631
        %v2652 = vmax.f32 %v2646, %v2634
        %v2653 = vmax.f32 %v2647, %v2637
        %v2654 = vmax.f32 %v2648, %v2640
        %v2655 = vmax.f32 %v2649, %v2643
        %v2656 = vsel %vm1633, %v2651, -inf
        %v2657 = vsel %vm1633, %v2652, -inf
        %v2658 = vsel %vm1633, %v2653, -inf
        %v2659 = vsel %vm1633, %v2654, -inf
        %v2660 = vsel %vm1633, %v2655, -inf
        %v2661 = vmax.f32 %v2656, %v2660
        %v2662 = vsel %vm1633, %v2650, -inf
        %v2663 = vmax.f32 %v2657, %v2662
        %v2664 = vmax.f32 %v2661, %v2663
        %v2665 = vmax.f32 %v2658, %v2659
        %v2666 = vmax.f32 %v2664, %v2665
        %v2667 = vld [vmem:[%s6] sm:$0xff]
        %v2668 = vld [vmem:[%s6 + $0x8] sm:$0xff]
        %v2669 = vld [vmem:[%s6 + $0x10] sm:$0xff]
        %v2670 = vld [vmem:[%s6 + $0x18] sm:$0xff]
        %v2671 = vld [vmem:[%s7] sm:$0x1]
        %v2673 = vlaneseq
        %v2674 = vshrl.u32 %v2673, 7
        %v2675 = vsub.s32 0, %v2674
        %v2676 = vrot.slane %v2671, %v2675
        %v2679 = vsel %vm1633, %v2666, 0
        %2681 = vmatprep.subr.mxu0 0.0
        %2682 = vmatpush1.msra.mxu0 %v2667
        %2683 = vmatprep.subr.mxu0 0.0
        %2684 = vmatpush1.msra.mxu0 %v2668
        %2685 = vmatprep.subr.mxu0 0.0
        %2686 = vmatpush1.msra.mxu0 %v2669
        %2687 = vmatprep.subr.mxu0 0.0
        %2688 = vmatpush1.msra.mxu0 %v2670
        %2689 = vmatprep.subr.mxu0 0.0
        %2690 = vmatpush1.msra.mxu0 0.0
        %2691 = vmatprep.subr.mxu0 0.0
        %2692 = vmatpush1.msra.mxu0 0.0
        %2693 = vmatprep.subr.mxu0 0.0
        %2694 = vmatpush1.msra.mxu0 0.0
        %2695 = vmatprep.subr.mxu0 0.0
        %2696 = vmatpush1.msra.mxu0 0.0
        %2697 = vmatprep.subr.mxu0 0.0
        %2698 = vmatpush1.msra.mxu0 0.0
        %2699 = vmatprep.subr.mxu0 0.0
        %2700 = vmatpush1.msra.mxu0 0.0
        %2701 = vmatprep.subr.mxu0 0.0
        %2702 = vmatpush1.msra.mxu0 0.0
        %2703 = vmatprep.subr.mxu0 0.0
        %2704 = vmatpush1.msra.mxu0 0.0
        %2705 = vmatprep.subr.mxu0 0.0
        %2706 = vmatpush1.msra.mxu0 0.0
        %2707 = vmatprep.subr.mxu0 0.0
        %2708 = vmatpush1.msra.mxu0 0.0
        %2709 = vmatprep.subr.mxu0 0.0
        %2710 = vmatpush1.msra.mxu0 0.0
        %2711 = vmatprep.subr.mxu0 0.0
        %2712 = vmatpush1.msra.mxu0 0.0
        %2713 = vmatprep.subr.mxu0 0.0
        %2714 = vmatpush1.msra.mxu0 0.0
        %2715 = vmatprep.subr.mxu0 0.0
        %2716 = vmatpush1.msra.mxu0 0.0
        %2717 = vmatprep.subr.mxu0 0.0
        %2718 = vmatpush1.msra.mxu0 0.0
        %2719 = vmatprep.subr.mxu0 0.0
        %2720 = vmatpush1.msra.mxu0 0.0
        %2721 = vmatprep.subr.mxu0 0.0
        %2722 = vmatpush1.msra.mxu0 0.0
        %2723 = vmatprep.subr.mxu0 0.0
        %2724 = vmatpush1.msra.mxu0 0.0
        %2725 = vmatprep.subr.mxu0 0.0
        %2726 = vmatpush1.msra.mxu0 0.0
        %2727 = vmatprep.subr.mxu0 0.0
        %2728 = vmatpush1.msra.mxu0 0.0
        %2729 = vmatprep.subr.mxu0 0.0
        %2730 = vmatpush1.msra.mxu0 0.0
        %2731 = vmatprep.subr.mxu0 0.0
        %2732 = vmatpush1.msra.mxu0 0.0
        %2733 = vmatprep.subr.mxu0 0.0
        %2734 = vmatpush1.msra.mxu0 0.0
        %2735 = vmatprep.subr.mxu0 0.0
        %2736 = vmatpush1.msra.mxu0 0.0
        %2737 = vmatprep.subr.mxu0 0.0
        %2738 = vmatpush1.msra.mxu0 0.0
        %2739 = vmatprep.subr.mxu0 0.0
        %2740 = vmatpush1.msra.mxu0 0.0
        %2741 = vmatprep.subr.mxu0 0.0
        %2742 = vmatpush1.msra.mxu0 0.0
        %2743 = vmatprep.subr.mxu0 0.0
        %2744 = vmatpush1.msra.mxu0 0.0
        %2745 = vmatprep.mubr.f32.mxu0 0.0
        %2746 = vmatmul.mubr.f32.gmra.mrb[0].mxu0 %v2679
        %v2747 = vpop.f32.mrb[0].mxu0
        %v2748 = vadd.f32 %v2676, %v2747
        %v2749 = vpop.f32.mrb[0].mxu0
        %2750 = vdwg.mxu0
        %2751 = vst [vmem:[%s298] sm:$0xff] %v2748
        %s2752 = sand.u32 %s203, 1
        %s2753 = scalar_lea.sflag [#allocation3], %s2752
        %s2754 = sand.u32 %s203, 1
        %s2755 = smul.addr %s2754, 8
        %s2756 = scalar_lea.vmem [#allocation2], %s2755
        // Predicated region
        $region53: #{tpu_custom_call.1} parent=51 // pred_check
          %p2757 = pneg %p213
        $region54: #{tpu_custom_call.1} parent=51 // pred_check_branch
          %2759 = sbr.rel (%p2757) target = $region56
        $region55: #{tpu_custom_call.1} parent=51 // pred_region
          %s2761 = ssub.s32 128, 128
          %2762 = vsyncadd %s2753, %s2761
          %s2763 = smul.addr %s22, 128
          %s2764 = scalar_lea.hbm %s8, %s2763
          %s2766 = sshll.u32 %s2756, 4
          %s2767 = int_to_ptr.vmem [resolvable:$true] %s2766
          %2769 = dma.vmem_to_hbm [thread:$0]  %s2767, 128, %s2764, %s2753
        $region56: #{tpu_custom_call.1} parent=51 // pred_fallthru
          _
      $region52: #{tpu_custom_call.1} parent=5 // pred_fallthru
        _
      %p2770 = scmp.le.s32.totalorder 2, %s17
      // Predicated region
      $region57: #{tpu_custom_call.1} parent=5 // pred_check
        %p2771 = pneg %p2770
      $region58: #{tpu_custom_call.1} parent=5 // pred_check_branch
        %2773 = sbr.rel (%p2771) target = $region60
      $region59: #{tpu_custom_call.1} parent=5 // pred_region
        %s2774 = ssub.s32 %s17, 2
        // Predicated region
        $region61: #{tpu_custom_call.1} parent=59 // pred_check
          %p2775 = pneg %p219
        $region62: #{tpu_custom_call.1} parent=59 // pred_check_branch
          %2777 = sbr.rel (%p2775) target = $region64
        $region63: #{tpu_custom_call.1} parent=59 // pred_region
          %s2778 = sand.u32 %s204, 1
          %s2779 = scalar_lea.sflag [#allocation3], %s2778
          %s2780 = sand.u32 %s204, 1
          %s2781 = smul.addr %s2780, 8
          %s2782 = scalar_lea.vmem [#allocation2], %s2781
          %2783 = dma.done %s2779, 128
        $region64: #{tpu_custom_call.1} parent=59 // pred_fallthru
          _
      $region60: #{tpu_custom_call.1} parent=5 // pred_fallthru
        _
    $region6: #{tpu_custom_call.1} parent=1 // loop_footer
      %s21 = sadd.s32 1, %s17
    $region7: #{tpu_custom_call.1} parent=1 // loop_footer_branch
      %16 = sbr.rel target = $region3
    $region8: #{tpu_custom_call.1} parent=1 // loop_exit
      _
    %2784 = vsyncpa [#allocation3], 1
    %s2785 = scalar_lea.sflag [#allocation3], 1
    %2786 = vsyncpa %s2785, 1

</llo_original>
